<compile_context>
chip_gen: v5e
topology: v5e:2x2
jax: 0.10.0
libtpu: 0.0.40
codegen_flags: <defaults>
</compile_context>

<pallas_src>
import functools

import jax
import jax.numpy as jnp
from jax.experimental import pallas as pl
from jax.experimental.pallas import tpu as pltpu

EPS = 1e-5
_MIB = 1024 * 1024


def _round_up(v, m):
    return (v + m - 1) // m * m


def _pad_axis(a, axis, target):
    pad = target - a.shape[axis]
    if pad == 0:
        return a
    cfg = [(0, 0)] * a.ndim
    cfg[axis] = (0, pad)
    return jnp.pad(a, cfg)


def bottleneck_kernel(x_ref, w1_ref, w2_ref, w3_ref, b1_ref, b2_ref, b3_ref,
                      o_ref, pad_ref, *, NB, H, W, Pp, Cp):
    """Fused Bottleneck forward for a block of NB images.

    x_ref : (NB, H, W, Cp)        input block (Cp = 4*planes, padded to 128 lanes)
    w1_ref: (Cp, Pp)   compute-dtype  1x1 conv as matmul (BN1 scale folded in)
    w2_ref: (9, Pp, Pp) compute-dtype 3x3 conv, tap-major (BN2 scale folded in)
    w3_ref: (Pp, Cp)   compute-dtype  1x1 conv as matmul (BN3 scale folded in)
    b*_ref: (1, Pp|Cp) f32            folded BatchNorm biases
    o_ref : (NB, H, W, Cp)
    pad_ref: (NB, H+2, W+2, Pp) compute-dtype  zero-padded stage-1 activation scratch
    """
    M = NB * H * W
    cdt = w1_ref.dtype                      # MXU operand dtype (bf16 prod / f32 debug)
    pdt = pad_ref.dtype

    # ---- stage 1: 1x1 conv (BN scale folded into w1) + bias + ReLU ----
    x_in = x_ref[...].reshape(M, Cp).astype(cdt)          # consumed immediately
    h1 = jnp.dot(x_in, w1_ref[...], preferred_element_type=jnp.float32)
    h1 = jnp.maximum(h1 + b1_ref[...], 0.0)               # (M, Pp) f32

    # ---- stage 2: 3x3 conv (stride 1, pad 1) as 9 accumulated MXU dots ----
    # The interior of pad_ref is fully overwritten every grid step; only the 1-pixel
    # border needs zeroing (done every step so "parallel" grid scheduling stays safe).
    zrow = jnp.zeros((NB, 1, W + 2, Pp), pdt)
    zcol = jnp.zeros((NB, H + 2, 1, Pp), pdt)
    pad_ref[:, 0:1, :, :] = zrow
    pad_ref[:, H + 1:H + 2, :, :] = zrow
    pad_ref[:, :, 0:1, :] = zcol
    pad_ref[:, :, W + 1:W + 2, :] = zcol
    pad_ref[:, 1:H + 1, 1:W + 1, :] = h1.astype(pdt).reshape(NB, H, W, Pp)

    # No im2col buffer: read each shifted window straight from pad_ref and accumulate.
    acc = None
    for ky in range(3):
        for kx in range(3):
            t = ky * 3 + kx
            win = pad_ref[:, ky:ky + H, kx:kx + W, :].reshape(M, Pp)
            d = jnp.dot(win, w2_ref[t], preferred_element_type=jnp.float32)
            acc = d if acc is None else acc + d
    h2 = jnp.maximum(acc + b2_ref[...], 0.0)               # (M, Pp) f32

    # ---- stage 3: 1x1 conv + bias + residual (f32) + ReLU ----
    h3 = jnp.dot(h2.astype(cdt), w3_ref[...], preferred_element_type=jnp.float32)
    h3 = h3 + b3_ref[...]
    res = x_ref[...].reshape(M, Cp).astype(jnp.float32)    # fresh read; not live earlier
    o_ref[...] = jnp.maximum(h3 + res, 0.0).reshape(NB, H, W, Cp).astype(o_ref.dtype)


# ----------------------------- host-side packing -----------------------------
def _fold_bn(gamma, beta, mean, var):
    scale = gamma / jnp.sqrt(var + EPS)
    bias = beta - mean * scale
    return scale.reshape(1, -1), bias.reshape(1, -1)


def pack_bottleneck_params(w1_pt, w2_pt, w3_pt, bn1, bn2, bn3,
                           *, compute_dtype=jnp.bfloat16):
    """Fold eval-mode BN into the conv weights, repack / pad / cast ONCE.

    Call this at model-load time and reuse the result for every forward pass.
    w*_pt: PyTorch-layout conv weights (O, I, kh, kw); bn* = (gamma, beta, mean, var).
    """
    planes, c_in = w1_pt.shape[0], w1_pt.shape[1]
    c_out = w3_pt.shape[0]
    assert c_in == c_out == 4 * planes, "stride=1 / downsample=None Bottleneck"
    Pp = _round_up(planes, 128)           # lane-dense bottleneck width
    Cp = _round_up(c_out, 128)            # lane-dense input/output width

    s1, b1 = _fold_bn(*bn1)
    s2, b2 = _fold_bn(*bn2)
    s3, b3 = _fold_bn(*bn3)

    # Fold the BN scale into the output-channel axis of each conv weight (in f32),
    # then pad to 128-multiples and cast to the MXU compute dtype. Padded weights /
    # biases are zero, so padded channels stay exactly zero end-to-end.
    w1 = jnp.transpose(w1_pt[:, :, 0, 0], (1, 0)) * s1                           # (C_in, P)
    w2 = jnp.transpose(w2_pt, (2, 3, 1, 0)).reshape(9, planes, planes) * s2.reshape(1, 1, -1)
    w3 = jnp.transpose(w3_pt[:, :, 0, 0], (1, 0)) * s3                           # (P, C_out)

    return dict(
        w1=_pad_axis(_pad_axis(w1, 0, Cp), 1, Pp).astype(compute_dtype),         # (Cp, Pp)
        w2=_pad_axis(_pad_axis(w2, 1, Pp), 2, Pp).astype(compute_dtype),         # (9, Pp, Pp)
        w3=_pad_axis(_pad_axis(w3, 0, Pp), 1, Cp).astype(compute_dtype),         # (Pp, Cp)
        b1=_pad_axis(b1, 1, Pp).astype(jnp.float32),
        b2=_pad_axis(b2, 1, Pp).astype(jnp.float32),
        b3=_pad_axis(b3, 1, Cp).astype(jnp.float32),
        planes=planes, c_out=c_out, Pp=Pp, Cp=Cp,
    )


# ----------------------------- per-chip sizing -----------------------------
def _vmem_limit_bytes():
    cap = 64 * _MIB                        # conservative default (v7x per-core VMEM)
    try:
        info = pltpu.get_tpu_info()
        cap = int(getattr(info, "vmem_capacity_bytes", cap)) or cap
    except Exception:
        pass
    # 112 MiB on 128-MiB parts (v5e/v6e), 48 MiB on 64-MiB parts (v7x).
    return int(min(max(cap - 16 * _MIB, 32 * _MIB), 112 * _MIB))


def _choose_block_batch(N, H, W, Pp, Cp, in_b, out_b, pad_b, budget):
    """Largest divisor of N whose per-step VMEM footprint fits `budget`,
    capped at N//2 so the parallel batch axis has >= 2 steps (2 TCs on v7x)."""
    def fits(nb):
        m = nb * H * W
        blocks = 2 * m * Cp * (in_b + out_b)            # double-buffered in+out blocks
        pad = nb * (H + 2) * (W + 2) * Pp * pad_b       # padded scratch (single copy)
        temps = 4 * m * (Pp + Cp) * 4                   # f32 intermediates headroom
        return blocks + pad + temps <= budget
    cap = N if N == 1 else N // 2
    best = 1
    for nb in range(1, cap + 1):
        if N % nb == 0 and fits(nb):
            best = nb
    return best


# ----------------------------- forward wrappers -----------------------------
def bottleneck_forward_nhwc(x_nhwc, params, *, block_batch=None):
    """x_nhwc: (N, H, W, C_in), C_in == planes*4. f32 activations give an exact
    residual path; passing bf16 x gives the bf16-activation (half-HBM-traffic) variant.
    Returns NHWC output in x's dtype."""
    N, H, W, C = x_nhwc.shape
    Pp, Cp, c_out = params["Pp"], params["Cp"], params["c_out"]
    assert C == c_out, "stride=1 / downsample=None requires inplanes == planes*4"

    w1p, w2p, w3p = params["w1"], params["w2"], params["w3"]
    b1p, b2p, b3p = params["b1"], params["b2"], params["b3"]
    pad_dtype = w1p.dtype                                  # compute dtype (bf16 / f32)

    xp = _pad_axis(x_nhwc, 3, Cp)

    in_b = x_nhwc.dtype.itemsize
    out_b = in_b
    pad_b = pad_dtype.itemsize
    w_bytes = sum(int(a.size) * a.dtype.itemsize
                  for a in (w1p, w2p, w3p, b1p, b2p, b3p))

    vmem_limit = _vmem_limit_bytes()
    if block_batch is None:
        nb = _choose_block_batch(N, H, W, Pp, Cp, in_b, out_b, pad_b,
                                 vmem_limit - w_bytes - 4 * _MIB)
    else:
        nb = block_batch
    assert N % nb == 0

    M_total = N * H * W
    flops = 2 * M_total * (Cp * Pp + 9 * Pp * Pp + Pp * Cp)
    bytes_accessed = M_total * Cp * (in_b + out_b) + w_bytes
    cost = pl.CostEstimate(flops=flops, transcendentals=0,
                           bytes_accessed=bytes_accessed)

    kernel = functools.partial(bottleneck_kernel, NB=nb, H=H, W=W, Pp=Pp, Cp=Cp)

    # Grid-invariant operands (weights / biases) live whole in VMEM: one copy,
    # no per-step double-buffered DMA.
    def vspec():
        return pl.BlockSpec(memory_space=pltpu.MemorySpace.VMEM)

    out = pl.pallas_call(
        kernel,
        out_shape=jax.ShapeDtypeStruct((N, H, W, Cp), x_nhwc.dtype),
        grid=(N // nb,),
        in_specs=[
            pl.BlockSpec((nb, H, W, Cp), lambda n: (n, 0, 0, 0)),
            vspec(), vspec(), vspec(),           # w1, w2, w3
            vspec(), vspec(), vspec(),           # b1, b2, b3
        ],
        out_specs=pl.BlockSpec((nb, H, W, Cp), lambda n: (n, 0, 0, 0)),
        scratch_shapes=[pltpu.VMEM((nb, H + 2, W + 2, Pp), pad_dtype)],
        compiler_params=pltpu.CompilerParams(
            dimension_semantics=("parallel",),   # independent batch blocks (2 TCs on v7x)
            vmem_limit_bytes=vmem_limit,
        ),
        cost_estimate=cost,
    )(xp, w1p, w2p, w3p, b1p, b2p, b3p)

    return out if Cp == c_out else out[..., :c_out]


def bottleneck_forward(x_nchw, params, *, block_batch=None):
    """PyTorch-layout (NCHW) wrapper; prefer bottleneck_forward_nhwc inside a network."""
    x_nhwc = jnp.transpose(x_nchw, (0, 2, 3, 1))
    out = bottleneck_forward_nhwc(x_nhwc, params, block_batch=block_batch)
    return jnp.transpose(out, (0, 3, 1, 2))


# ---------------- reference (plain JAX, NCHW like PyTorch, full f32) ----------------
def _conv_nchw(x, w_oihw, stride=1, padding=0):
    return jax.lax.conv_general_dilated(
        x, w_oihw, window_strides=(stride, stride),
        padding=[(padding, padding), (padding, padding)],
        dimension_numbers=("NCHW", "OIHW", "NCHW"))


def _bn_nchw(x, gamma, beta, mean, var):
    inv = gamma / jnp.sqrt(var + EPS)
    return (x - mean[None, :, None, None]) * inv[None, :, None, None] \
        + beta[None, :, None, None]


def reference_forward(x, w1_pt, w2_pt, w3_pt, bn1, bn2, bn3):
    out = jnp.maximum(_bn_nchw(_conv_nchw(x, w1_pt), *bn1), 0.0)
    out = jnp.maximum(_bn_nchw(_conv_nchw(out, w2_pt, stride=1, padding=1), *bn2), 0.0)
    out = _bn_nchw(_conv_nchw(out, w3_pt), *bn3)
    return jnp.maximum(out + x, 0.0)


def _bn_init(key, c):
    k1, k2, k3, k4 = jax.random.split(key, 4)
    gamma = 1.0 + 0.1 * jax.random.normal(k1, (c,), jnp.float32)
    beta = 0.1 * jax.random.normal(k2, (c,), jnp.float32)
    mean = 0.1 * jax.random.normal(k3, (c,), jnp.float32)
    var = jnp.abs(jax.random.normal(k4, (c,), jnp.float32)) + 0.5
    return gamma, beta, mean, var


if __name__ == "__main__":
    planes = 16
    inplanes = planes * 4          # expansion=4 so the residual add is valid
    N, H, W = 2, 8, 8

    keys = jax.random.split(jax.random.PRNGKey(0), 8)
    x = jax.random.normal(keys[0], (N, inplanes, H, W), jnp.float32)

    # PyTorch-convention conv weights (O, I, kh, kw), deterministic init
    w1_pt = 0.1 * jax.random.normal(keys[1], (planes, inplanes, 1, 1), jnp.float32)
    w2_pt = 0.1 * jax.random.normal(keys[2], (planes, planes, 3, 3), jnp.float32)
    w3_pt = 0.1 * jax.random.normal(keys[3], (inplanes, planes, 1, 1), jnp.float32)
    bn1 = _bn_init(keys[4], planes)
    bn2 = _bn_init(keys[5], planes)
    bn3 = _bn_init(keys[6], inplanes)

    ref = jax.block_until_ready(reference_forward(x, w1_pt, w2_pt, w3_pt, bn1, bn2, bn3))

    # f32-weight validation path (guards packing / layout / indexing bugs).
    params_f32 = pack_bottleneck_params(w1_pt, w2_pt, w3_pt, bn1, bn2, bn3,
                                        compute_dtype=jnp.float32)
    out_f32 = jax.block_until_ready(bottleneck_forward(x, params_f32))
    assert out_f32.shape == ref.shape == (N, inplanes, H, W)
    err_f32 = float(jnp.max(jnp.abs(out_f32 - ref)))
    assert jnp.allclose(out_f32, ref, rtol=2e-2, atol=2e-2), f"f32 path max abs err {err_f32}"

    # Production bf16-MXU path (f32 accumulation; residual stays f32-exact).
    params_bf16 = pack_bottleneck_params(w1_pt, w2_pt, w3_pt, bn1, bn2, bn3,
                                         compute_dtype=jnp.bfloat16)
    out_bf16 = jax.block_until_ready(bottleneck_forward(x, params_bf16))
    assert out_bf16.shape == ref.shape
    err_bf16 = float(jnp.max(jnp.abs(out_bf16 - ref)))
    assert jnp.allclose(out_bf16, ref, rtol=5e-2, atol=5e-2), f"bf16 path max abs err {err_bf16}"

    print("KERNEL_OK")
</pallas_src>

<mosaic_0001>
module attributes {stable_mosaic.version = 11 : i64} {
  func.func @bottleneck_kernel(%arg0: i32, %arg1: memref<1x8x8x128xf32, #tpu.memory_space<vmem>>, %arg2: memref<128x128xf32, #tpu.memory_space<vmem>>, %arg3: memref<9x128x128xf32, #tpu.memory_space<vmem>>, %arg4: memref<128x128xf32, #tpu.memory_space<vmem>>, %arg5: memref<1x128xf32, #tpu.memory_space<vmem>>, %arg6: memref<1x128xf32, #tpu.memory_space<vmem>>, %arg7: memref<1x128xf32, #tpu.memory_space<vmem>>, %arg8: memref<1x8x8x128xf32, #tpu.memory_space<vmem>>, %arg9: memref<1x10x10x128xf32, #tpu.memory_space<vmem>>) attributes {dimension_semantics = [#tpu.dimension_semantics<parallel>], iteration_bounds = array<i64: 2>, scalar_prefetch = 0 : i64, scratch_operands = 1 : i64, tpu.core_type = #tpu.core_type<tc>, window_params = [{transform_indices = @transform_0, window_bounds = array<i64: 1, 8, 8, 128>}, {pipeline_mode = #tpu.pipeline_mode<synchronous>, transform_indices = @transform_1, window_bounds = array<i64: 128, 128>}, {pipeline_mode = #tpu.pipeline_mode<synchronous>, transform_indices = @transform_2, window_bounds = array<i64: 9, 128, 128>}, {pipeline_mode = #tpu.pipeline_mode<synchronous>, transform_indices = @transform_3, window_bounds = array<i64: 128, 128>}, {pipeline_mode = #tpu.pipeline_mode<synchronous>, transform_indices = @transform_4, window_bounds = array<i64: 1, 128>}, {pipeline_mode = #tpu.pipeline_mode<synchronous>, transform_indices = @transform_5, window_bounds = array<i64: 1, 128>}, {pipeline_mode = #tpu.pipeline_mode<synchronous>, transform_indices = @transform_6, window_bounds = array<i64: 1, 128>}, {transform_indices = @transform_7, window_bounds = array<i64: 1, 8, 8, 128>}]} {
    %c0 = arith.constant 0 : index
    %c0_0 = arith.constant 0 : index
    %c0_1 = arith.constant 0 : index
    %c0_2 = arith.constant 0 : index
    %0 = vector.load %arg1[%c0, %c0_0, %c0_1, %c0_2] : memref<1x8x8x128xf32, #tpu.memory_space<vmem>>, vector<1x8x8x128xf32>
    %1 = vector.shape_cast %0 : vector<1x8x8x128xf32> to vector<64x128xf32>
    %c0_3 = arith.constant 0 : index
    %c0_4 = arith.constant 0 : index
    %2 = vector.load %arg2[%c0_3, %c0_4] : memref<128x128xf32, #tpu.memory_space<vmem>>, vector<128x128xf32>
    %cst = arith.constant dense<0.000000e+00> : vector<64x128xf32>
    %3 = tpu.matmul %1, %2, %cst {dimension_numbers = #tpu.dot_dimension_numbers<[1], [0], [0], [1], [0, 0, 1, 1], [], []>} : vector<64x128xf32>, vector<128x128xf32>, vector<64x128xf32> -> vector<64x128xf32>
    %c0_5 = arith.constant 0 : index
    %c0_6 = arith.constant 0 : index
    %4 = vector.load %arg5[%c0_5, %c0_6] : memref<1x128xf32, #tpu.memory_space<vmem>>, vector<1x128xf32>
    %5 = vector.broadcast %4 : vector<1x128xf32> to vector<64x128xf32>
    %6 = arith.addf %3, %5 : vector<64x128xf32>
    %cst_7 = arith.constant 0.000000e+00 : f32
    %7 = vector.broadcast %cst_7 : f32 to vector<64x128xf32>
    %8 = arith.maximumf %6, %7 : vector<64x128xf32>
    %cst_8 = arith.constant 0.000000e+00 : f32
    %9 = vector.broadcast %cst_8 : f32 to vector<1x1x10x128xf32>
    %cst_9 = arith.constant 0.000000e+00 : f32
    %10 = vector.broadcast %cst_9 : f32 to vector<1x10x1x128xf32>
    %c0_10 = arith.constant 0 : index
    %c0_11 = arith.constant 0 : index
    %c0_12 = arith.constant 0 : index
    %c0_13 = arith.constant 0 : index
    %11 = vector.load %arg9[%c0_10, %c0_11, %c0_12, %c0_13] : memref<1x10x10x128xf32, #tpu.memory_space<vmem>>, vector<1x1x10x128xf32>
    tpu.vector_store %arg9[%c0_10, %c0_11, %c0_12, %c0_13], %9 {strides = array<i32>} : memref<1x10x10x128xf32, #tpu.memory_space<vmem>>, vector<1x1x10x128xf32>,
    %c0_14 = arith.constant 0 : index
    %c9 = arith.constant 9 : index
    %c0_15 = arith.constant 0 : index
    %c0_16 = arith.constant 0 : index
    %12 = vector.load %arg9[%c0_14, %c9, %c0_15, %c0_16] : memref<1x10x10x128xf32, #tpu.memory_space<vmem>>, vector<1x1x10x128xf32>
    tpu.vector_store %arg9[%c0_14, %c9, %c0_15, %c0_16], %9 {strides = array<i32>} : memref<1x10x10x128xf32, #tpu.memory_space<vmem>>, vector<1x1x10x128xf32>,
    %c0_17 = arith.constant 0 : index
    %c0_18 = arith.constant 0 : index
    %c0_19 = arith.constant 0 : index
    %c0_20 = arith.constant 0 : index
    %13 = vector.load %arg9[%c0_17, %c0_18, %c0_19, %c0_20] : memref<1x10x10x128xf32, #tpu.memory_space<vmem>>, vector<1x10x1x128xf32>
    tpu.vector_store %arg9[%c0_17, %c0_18, %c0_19, %c0_20], %10 {strides = array<i32>} : memref<1x10x10x128xf32, #tpu.memory_space<vmem>>, vector<1x10x1x128xf32>,
    %c0_21 = arith.constant 0 : index
    %c0_22 = arith.constant 0 : index
    %c9_23 = arith.constant 9 : index
    %c0_24 = arith.constant 0 : index
    %14 = vector.load %arg9[%c0_21, %c0_22, %c9_23, %c0_24] : memref<1x10x10x128xf32, #tpu.memory_space<vmem>>, vector<1x10x1x128xf32>
    tpu.vector_store %arg9[%c0_21, %c0_22, %c9_23, %c0_24], %10 {strides = array<i32>} : memref<1x10x10x128xf32, #tpu.memory_space<vmem>>, vector<1x10x1x128xf32>,
    %15 = vector.shape_cast %8 : vector<64x128xf32> to vector<1x8x8x128xf32>
    %c0_25 = arith.constant 0 : index
    %c1 = arith.constant 1 : index
    %c1_26 = arith.constant 1 : index
    %c0_27 = arith.constant 0 : index
    %16 = vector.load %arg9[%c0_25, %c1, %c1_26, %c0_27] : memref<1x10x10x128xf32, #tpu.memory_space<vmem>>, vector<1x8x8x128xf32>
    tpu.vector_store %arg9[%c0_25, %c1, %c1_26, %c0_27], %15 {strides = array<i32>} : memref<1x10x10x128xf32, #tpu.memory_space<vmem>>, vector<1x8x8x128xf32>,
    %c0_28 = arith.constant 0 : index
    %c0_29 = arith.constant 0 : index
    %c0_30 = arith.constant 0 : index
    %c0_31 = arith.constant 0 : index
    %17 = vector.load %arg9[%c0_28, %c0_29, %c0_30, %c0_31] : memref<1x10x10x128xf32, #tpu.memory_space<vmem>>, vector<1x8x8x128xf32>
    %18 = vector.shape_cast %17 : vector<1x8x8x128xf32> to vector<64x128xf32>
    %c0_32 = arith.constant 0 : index
    %c0_33 = arith.constant 0 : index
    %c0_34 = arith.constant 0 : index
    %19 = vector.load %arg3[%c0_32, %c0_33, %c0_34] : memref<9x128x128xf32, #tpu.memory_space<vmem>>, vector<1x128x128xf32>
    %20 = vector.shape_cast %19 : vector<1x128x128xf32> to vector<128x128xf32>
    %cst_35 = arith.constant dense<0.000000e+00> : vector<64x128xf32>
    %21 = tpu.matmul %18, %20, %cst_35 {dimension_numbers = #tpu.dot_dimension_numbers<[1], [0], [0], [1], [0, 0, 1, 1], [], []>} : vector<64x128xf32>, vector<128x128xf32>, vector<64x128xf32> -> vector<64x128xf32>
    %c0_36 = arith.constant 0 : index
    %c0_37 = arith.constant 0 : index
    %c1_38 = arith.constant 1 : index
    %c0_39 = arith.constant 0 : index
    %22 = vector.load %arg9[%c0_36, %c0_37, %c1_38, %c0_39] : memref<1x10x10x128xf32, #tpu.memory_space<vmem>>, vector<1x8x8x128xf32>
    %23 = vector.shape_cast %22 : vector<1x8x8x128xf32> to vector<64x128xf32>
    %c1_40 = arith.constant 1 : index
    %c0_41 = arith.constant 0 : index
    %c0_42 = arith.constant 0 : index
    %24 = vector.load %arg3[%c1_40, %c0_41, %c0_42] : memref<9x128x128xf32, #tpu.memory_space<vmem>>, vector<1x128x128xf32>
    %25 = vector.shape_cast %24 : vector<1x128x128xf32> to vector<128x128xf32>
    %cst_43 = arith.constant dense<0.000000e+00> : vector<64x128xf32>
    %26 = tpu.matmul %23, %25, %cst_43 {dimension_numbers = #tpu.dot_dimension_numbers<[1], [0], [0], [1], [0, 0, 1, 1], [], []>} : vector<64x128xf32>, vector<128x128xf32>, vector<64x128xf32> -> vector<64x128xf32>
    %27 = arith.addf %21, %26 : vector<64x128xf32>
    %c0_44 = arith.constant 0 : index
    %c0_45 = arith.constant 0 : index
    %c2 = arith.constant 2 : index
    %c0_46 = arith.constant 0 : index
    %28 = vector.load %arg9[%c0_44, %c0_45, %c2, %c0_46] : memref<1x10x10x128xf32, #tpu.memory_space<vmem>>, vector<1x8x8x128xf32>
    %29 = vector.shape_cast %28 : vector<1x8x8x128xf32> to vector<64x128xf32>
    %c2_47 = arith.constant 2 : index
    %c0_48 = arith.constant 0 : index
    %c0_49 = arith.constant 0 : index
    %30 = vector.load %arg3[%c2_47, %c0_48, %c0_49] : memref<9x128x128xf32, #tpu.memory_space<vmem>>, vector<1x128x128xf32>
    %31 = vector.shape_cast %30 : vector<1x128x128xf32> to vector<128x128xf32>
    %cst_50 = arith.constant dense<0.000000e+00> : vector<64x128xf32>
    %32 = tpu.matmul %29, %31, %cst_50 {dimension_numbers = #tpu.dot_dimension_numbers<[1], [0], [0], [1], [0, 0, 1, 1], [], []>} : vector<64x128xf32>, vector<128x128xf32>, vector<64x128xf32> -> vector<64x128xf32>
    %33 = arith.addf %27, %32 : vector<64x128xf32>
    %c0_51 = arith.constant 0 : index
    %c1_52 = arith.constant 1 : index
    %c0_53 = arith.constant 0 : index
    %c0_54 = arith.constant 0 : index
    %34 = vector.load %arg9[%c0_51, %c1_52, %c0_53, %c0_54] : memref<1x10x10x128xf32, #tpu.memory_space<vmem>>, vector<1x8x8x128xf32>
    %35 = vector.shape_cast %34 : vector<1x8x8x128xf32> to vector<64x128xf32>
    %c3 = arith.constant 3 : index
    %c0_55 = arith.constant 0 : index
    %c0_56 = arith.constant 0 : index
    %36 = vector.load %arg3[%c3, %c0_55, %c0_56] : memref<9x128x128xf32, #tpu.memory_space<vmem>>, vector<1x128x128xf32>
    %37 = vector.shape_cast %36 : vector<1x128x128xf32> to vector<128x128xf32>
    %cst_57 = arith.constant dense<0.000000e+00> : vector<64x128xf32>
    %38 = tpu.matmul %35, %37, %cst_57 {dimension_numbers = #tpu.dot_dimension_numbers<[1], [0], [0], [1], [0, 0, 1, 1], [], []>} : vector<64x128xf32>, vector<128x128xf32>, vector<64x128xf32> -> vector<64x128xf32>
    %39 = arith.addf %33, %38 : vector<64x128xf32>
    %c0_58 = arith.constant 0 : index
    %c1_59 = arith.constant 1 : index
    %c1_60 = arith.constant 1 : index
    %c0_61 = arith.constant 0 : index
    %40 = vector.load %arg9[%c0_58, %c1_59, %c1_60, %c0_61] : memref<1x10x10x128xf32, #tpu.memory_space<vmem>>, vector<1x8x8x128xf32>
    %41 = vector.shape_cast %40 : vector<1x8x8x128xf32> to vector<64x128xf32>
    %c4 = arith.constant 4 : index
    %c0_62 = arith.constant 0 : index
    %c0_63 = arith.constant 0 : index
    %42 = vector.load %arg3[%c4, %c0_62, %c0_63] : memref<9x128x128xf32, #tpu.memory_space<vmem>>, vector<1x128x128xf32>
    %43 = vector.shape_cast %42 : vector<1x128x128xf32> to vector<128x128xf32>
    %cst_64 = arith.constant dense<0.000000e+00> : vector<64x128xf32>
    %44 = tpu.matmul %41, %43, %cst_64 {dimension_numbers = #tpu.dot_dimension_numbers<[1], [0], [0], [1], [0, 0, 1, 1], [], []>} : vector<64x128xf32>, vector<128x128xf32>, vector<64x128xf32> -> vector<64x128xf32>
    %45 = arith.addf %39, %44 : vector<64x128xf32>
    %c0_65 = arith.constant 0 : index
    %c1_66 = arith.constant 1 : index
    %c2_67 = arith.constant 2 : index
    %c0_68 = arith.constant 0 : index
    %46 = vector.load %arg9[%c0_65, %c1_66, %c2_67, %c0_68] : memref<1x10x10x128xf32, #tpu.memory_space<vmem>>, vector<1x8x8x128xf32>
    %47 = vector.shape_cast %46 : vector<1x8x8x128xf32> to vector<64x128xf32>
    %c5 = arith.constant 5 : index
    %c0_69 = arith.constant 0 : index
    %c0_70 = arith.constant 0 : index
    %48 = vector.load %arg3[%c5, %c0_69, %c0_70] : memref<9x128x128xf32, #tpu.memory_space<vmem>>, vector<1x128x128xf32>
    %49 = vector.shape_cast %48 : vector<1x128x128xf32> to vector<128x128xf32>
    %cst_71 = arith.constant dense<0.000000e+00> : vector<64x128xf32>
    %50 = tpu.matmul %47, %49, %cst_71 {dimension_numbers = #tpu.dot_dimension_numbers<[1], [0], [0], [1], [0, 0, 1, 1], [], []>} : vector<64x128xf32>, vector<128x128xf32>, vector<64x128xf32> -> vector<64x128xf32>
    %51 = arith.addf %45, %50 : vector<64x128xf32>
    %c0_72 = arith.constant 0 : index
    %c2_73 = arith.constant 2 : index
    %c0_74 = arith.constant 0 : index
    %c0_75 = arith.constant 0 : index
    %52 = vector.load %arg9[%c0_72, %c2_73, %c0_74, %c0_75] : memref<1x10x10x128xf32, #tpu.memory_space<vmem>>, vector<1x8x8x128xf32>
    %53 = vector.shape_cast %52 : vector<1x8x8x128xf32> to vector<64x128xf32>
    %c6 = arith.constant 6 : index
    %c0_76 = arith.constant 0 : index
    %c0_77 = arith.constant 0 : index
    %54 = vector.load %arg3[%c6, %c0_76, %c0_77] : memref<9x128x128xf32, #tpu.memory_space<vmem>>, vector<1x128x128xf32>
    %55 = vector.shape_cast %54 : vector<1x128x128xf32> to vector<128x128xf32>
    %cst_78 = arith.constant dense<0.000000e+00> : vector<64x128xf32>
    %56 = tpu.matmul %53, %55, %cst_78 {dimension_numbers = #tpu.dot_dimension_numbers<[1], [0], [0], [1], [0, 0, 1, 1], [], []>} : vector<64x128xf32>, vector<128x128xf32>, vector<64x128xf32> -> vector<64x128xf32>
    %57 = arith.addf %51, %56 : vector<64x128xf32>
    %c0_79 = arith.constant 0 : index
    %c2_80 = arith.constant 2 : index
    %c1_81 = arith.constant 1 : index
    %c0_82 = arith.constant 0 : index
    %58 = vector.load %arg9[%c0_79, %c2_80, %c1_81, %c0_82] : memref<1x10x10x128xf32, #tpu.memory_space<vmem>>, vector<1x8x8x128xf32>
    %59 = vector.shape_cast %58 : vector<1x8x8x128xf32> to vector<64x128xf32>
    %c7 = arith.constant 7 : index
    %c0_83 = arith.constant 0 : index
    %c0_84 = arith.constant 0 : index
    %60 = vector.load %arg3[%c7, %c0_83, %c0_84] : memref<9x128x128xf32, #tpu.memory_space<vmem>>, vector<1x128x128xf32>
    %61 = vector.shape_cast %60 : vector<1x128x128xf32> to vector<128x128xf32>
    %cst_85 = arith.constant dense<0.000000e+00> : vector<64x128xf32>
    %62 = tpu.matmul %59, %61, %cst_85 {dimension_numbers = #tpu.dot_dimension_numbers<[1], [0], [0], [1], [0, 0, 1, 1], [], []>} : vector<64x128xf32>, vector<128x128xf32>, vector<64x128xf32> -> vector<64x128xf32>
    %63 = arith.addf %57, %62 : vector<64x128xf32>
    %c0_86 = arith.constant 0 : index
    %c2_87 = arith.constant 2 : index
    %c2_88 = arith.constant 2 : index
    %c0_89 = arith.constant 0 : index
    %64 = vector.load %arg9[%c0_86, %c2_87, %c2_88, %c0_89] : memref<1x10x10x128xf32, #tpu.memory_space<vmem>>, vector<1x8x8x128xf32>
    %65 = vector.shape_cast %64 : vector<1x8x8x128xf32> to vector<64x128xf32>
    %c8 = arith.constant 8 : index
    %c0_90 = arith.constant 0 : index
    %c0_91 = arith.constant 0 : index
    %66 = vector.load %arg3[%c8, %c0_90, %c0_91] : memref<9x128x128xf32, #tpu.memory_space<vmem>>, vector<1x128x128xf32>
    %67 = vector.shape_cast %66 : vector<1x128x128xf32> to vector<128x128xf32>
    %cst_92 = arith.constant dense<0.000000e+00> : vector<64x128xf32>
    %68 = tpu.matmul %65, %67, %cst_92 {dimension_numbers = #tpu.dot_dimension_numbers<[1], [0], [0], [1], [0, 0, 1, 1], [], []>} : vector<64x128xf32>, vector<128x128xf32>, vector<64x128xf32> -> vector<64x128xf32>
    %69 = arith.addf %63, %68 : vector<64x128xf32>
    %c0_93 = arith.constant 0 : index
    %c0_94 = arith.constant 0 : index
    %70 = vector.load %arg6[%c0_93, %c0_94] : memref<1x128xf32, #tpu.memory_space<vmem>>, vector<1x128xf32>
    %71 = vector.broadcast %70 : vector<1x128xf32> to vector<64x128xf32>
    %72 = arith.addf %69, %71 : vector<64x128xf32>
    %cst_95 = arith.constant 0.000000e+00 : f32
    %73 = vector.broadcast %cst_95 : f32 to vector<64x128xf32>
    %74 = arith.maximumf %72, %73 : vector<64x128xf32>
    %c0_96 = arith.constant 0 : index
    %c0_97 = arith.constant 0 : index
    %75 = vector.load %arg4[%c0_96, %c0_97] : memref<128x128xf32, #tpu.memory_space<vmem>>, vector<128x128xf32>
    %cst_98 = arith.constant dense<0.000000e+00> : vector<64x128xf32>
    %76 = tpu.matmul %74, %75, %cst_98 {dimension_numbers = #tpu.dot_dimension_numbers<[1], [0], [0], [1], [0, 0, 1, 1], [], []>} : vector<64x128xf32>, vector<128x128xf32>, vector<64x128xf32> -> vector<64x128xf32>
    %c0_99 = arith.constant 0 : index
    %c0_100 = arith.constant 0 : index
    %77 = vector.load %arg7[%c0_99, %c0_100] : memref<1x128xf32, #tpu.memory_space<vmem>>, vector<1x128xf32>
    %78 = vector.broadcast %77 : vector<1x128xf32> to vector<64x128xf32>
    %79 = arith.addf %76, %78 : vector<64x128xf32>
    %c0_101 = arith.constant 0 : index
    %c0_102 = arith.constant 0 : index
    %c0_103 = arith.constant 0 : index
    %c0_104 = arith.constant 0 : index
    %80 = vector.load %arg1[%c0_101, %c0_102, %c0_103, %c0_104] : memref<1x8x8x128xf32, #tpu.memory_space<vmem>>, vector<1x8x8x128xf32>
    %81 = vector.shape_cast %80 : vector<1x8x8x128xf32> to vector<64x128xf32>
    %82 = arith.addf %79, %81 : vector<64x128xf32>
    %cst_105 = arith.constant 0.000000e+00 : f32
    %83 = vector.broadcast %cst_105 : f32 to vector<64x128xf32>
    %84 = arith.maximumf %82, %83 : vector<64x128xf32>
    %85 = vector.shape_cast %84 : vector<64x128xf32> to vector<1x8x8x128xf32>
    %c0_106 = arith.constant 0 : index
    %c0_107 = arith.constant 0 : index
    %c0_108 = arith.constant 0 : index
    %c0_109 = arith.constant 0 : index
    %86 = vector.load %arg8[%c0_106, %c0_107, %c0_108, %c0_109] : memref<1x8x8x128xf32, #tpu.memory_space<vmem>>, vector<1x8x8x128xf32>
    tpu.vector_store %arg8[%c0_106, %c0_107, %c0_108, %c0_109], %85 {strides = array<i32>} : memref<1x8x8x128xf32, #tpu.memory_space<vmem>>, vector<1x8x8x128xf32>,
    return
  }
  func.func @transform_0(%arg0: i32) -> (i32, i32, i32, i32) {
    %c0_i32 = arith.constant 0 : i32
    %c0_i32_0 = arith.constant 0 : i32
    %c0_i32_1 = arith.constant 0 : i32
    %c0_i32_2 = arith.constant 0 : i32
    return %arg0, %c0_i32, %c0_i32_0, %c0_i32_1 : i32, i32, i32, i32
  }
  func.func @transform_1(%arg0: i32) -> (i32, i32) {
    %c0_i32 = arith.constant 0 : i32
    %c0_i32_0 = arith.constant 0 : i32
    %c0_i32_1 = arith.constant 0 : i32
    return %c0_i32, %c0_i32_0 : i32, i32
  }
  func.func @transform_2(%arg0: i32) -> (i32, i32, i32) {
    %c0_i32 = arith.constant 0 : i32
    %c0_i32_0 = arith.constant 0 : i32
    %c0_i32_1 = arith.constant 0 : i32
    %c0_i32_2 = arith.constant 0 : i32
    return %c0_i32, %c0_i32_0, %c0_i32_1 : i32, i32, i32
  }
  func.func @transform_3(%arg0: i32) -> (i32, i32) {
    %c0_i32 = arith.constant 0 : i32
    %c0_i32_0 = arith.constant 0 : i32
    %c0_i32_1 = arith.constant 0 : i32
    return %c0_i32, %c0_i32_0 : i32, i32
  }
  func.func @transform_4(%arg0: i32) -> (i32, i32) {
    %c0_i32 = arith.constant 0 : i32
    %c0_i32_0 = arith.constant 0 : i32
    %c0_i32_1 = arith.constant 0 : i32
    return %c0_i32, %c0_i32_0 : i32, i32
  }
  func.func @transform_5(%arg0: i32) -> (i32, i32) {
    %c0_i32 = arith.constant 0 : i32
    %c0_i32_0 = arith.constant 0 : i32
    %c0_i32_1 = arith.constant 0 : i32
    return %c0_i32, %c0_i32_0 : i32, i32
  }
  func.func @transform_6(%arg0: i32) -> (i32, i32) {
    %c0_i32 = arith.constant 0 : i32
    %c0_i32_0 = arith.constant 0 : i32
    %c0_i32_1 = arith.constant 0 : i32
    return %c0_i32, %c0_i32_0 : i32, i32
  }
  func.func @transform_7(%arg0: i32) -> (i32, i32, i32, i32) {
    %c0_i32 = arith.constant 0 : i32
    %c0_i32_0 = arith.constant 0 : i32
    %c0_i32_1 = arith.constant 0 : i32
    %c0_i32_2 = arith.constant 0 : i32
    return %arg0, %c0_i32, %c0_i32_0, %c0_i32_1 : i32, i32, i32, i32
  }
}

</mosaic_0001>

<llo_original>
// kernel: tpu_custom_call.1
$region0: #{tpu_custom_call.1}
  #allocation0 [shape = 'u32[]', space=smem, size = 0x4, offset = 0x4, fixed_abs, tag = 'smem constant byte address 0x4 - core index']
  #allocation1 [shape = 'u32[72,128]{1,0:T(1,128)}', space=vmem, size = 0x9000, scoped, tag = 'internal scratch']
  #allocation2 [shape = 'f32[1,10,10,128]{3,2,1,0:T(8,128)}', space=vmem, size = 0x14000, scoped, tag = 'scratch operand']
  %s0 = inlined_call_operand.hbm [shape: f32[2,8,8,128], index: 0, kind: input, shape index: {}]
  %s1 = inlined_call_operand.hbm [shape: f32[128,128], index: 1, kind: input, shape index: {}]
  %s2 = inlined_call_operand.hbm [shape: f32[9,128,128], index: 2, kind: input, shape index: {}]
  %s3 = inlined_call_operand.hbm [shape: f32[128,128], index: 3, kind: input, shape index: {}]
  %s4 = inlined_call_operand.vmem [shape: f32[1,128], index: 4, kind: input, shape index: {}]
  %s5 = inlined_call_operand.vmem [shape: f32[1,128], index: 5, kind: input, shape index: {}]
  %s6 = inlined_call_operand.vmem [shape: f32[1,128], index: 6, kind: input, shape index: {}]
  %s7 = inlined_call_operand.hbm [shape: f32[2,8,8,128], index: 7, kind: output, shape index: {}]
  %s8 = sld [smem:[#allocation0]]
  $region77: #{tpu_custom_call.1} parent=0
    _
  %s10 = ssub.s32 1, %s8
  %s11 = scalar_select 0, %s10, %s8
  $region1: #{tpu_custom_call.1} parent=0
    #allocation3 [shape = 'u8[65536]{0}', space=vmem, size = 0x10000, scoped, tag = 'input window, operand 0']
    #allocation4 [shape = 's32[2]{0}', space=sflag, size = 0x8, scoped, tag = 'scoped memory for tpu_custom_call.1']
    #allocation5 [shape = 's32[2]{0}', space=sflag, size = 0x8, scoped, tag = 'scoped memory for tpu_custom_call.1']
    #allocation6 [shape = 'u8[65536]{0}', space=vmem, size = 0x10000, scoped, tag = 'input window, operand 1, single buffered']
    #allocation7 [shape = 's32[1]{0}', space=sflag, size = 0x4, scoped, tag = 'scoped memory for tpu_custom_call.1']
    #allocation8 [shape = 'u8[589824]{0}', space=vmem, size = 0x90000, scoped, tag = 'input window, operand 2, single buffered']
    #allocation9 [shape = 'u8[65536]{0}', space=vmem, size = 0x10000, scoped, tag = 'input window, operand 3, single buffered']
    #allocation10 [shape = 's32[1]{0}', space=sflag, size = 0x4, scoped, tag = 'scoped memory for tpu_custom_call.1']
    #allocation11 [shape = 'u8[65536]{0}', space=vmem, size = 0x10000, scoped, tag = 'output window, operand 0']
    %12 = vsyncpa [#allocation4], 0
    %s13 = scalar_lea.sflag [#allocation4], 1
    %14 = vsyncpa %s13, 0
    %15 = vsyncpa [#allocation7], 0
    %16 = vsyncpa [#allocation10], 0
    %17 = vsyncpa [#allocation5], 0
    %s18 = scalar_lea.sflag [#allocation5], 1
    %19 = vsyncpa %s18, 0
    loop: start=0, step=1, limit=4
    $region2: #{tpu_custom_call.1} parent=1 // loop_pre_header
      _
    $region3: #{tpu_custom_call.1} parent=1 // loop_header
      %s21 = sphi 0, %s25
      %p22 = scmp.ge.s32.totalorder %s21, 4
      %s31 = sphi 0, %s33
      %s34 = sphi 0, %s31
      %s35 = sphi 0, %s34
      %s51 = sphi 0, %s35
      %s55 = sphi 0, %s55
      %s57 = sphi 0, %s55
      %s58 = sphi 0, %s57
      %s72 = sphi 0, %s58
      %s76 = sphi 0, %s76
      %s78 = sphi 0, %s76
      %s79 = sphi 0, %s78
      %s93 = sphi 0, %s79
      %s97 = sphi 0, %s97
      %s99 = sphi 0, %s97
      %s100 = sphi 0, %s99
      %s114 = sphi 0, %s100
      %s118 = sphi 0, %s118
      %s120 = sphi 0, %s118
      %s121 = sphi 0, %s120
      %s135 = sphi 0, %s121
      %s139 = sphi 0, %s139
      %s141 = sphi 0, %s139
      %s142 = sphi 0, %s141
      %s156 = sphi 0, %s142
      %s160 = sphi 0, %s160
      %s162 = sphi 0, %s160
      %s163 = sphi 0, %s162
      %s177 = sphi 0, %s163
      %s183 = sphi 0, %s185
      %s186 = sphi 0, %s183
      %s187 = sphi 0, %s186
      %s203 = sphi 0, %s187
    $region4: #{tpu_custom_call.1} parent=1 // loop_header_branch
      %24 = sbr.rel (%p22) target = $region8
    $region5: #{tpu_custom_call.1} parent=1 // loop_body
      %s26 = ssub.s32 %s21, 1
      %s27 = ssub.s32 %s21, 2
      %s28 = sadd.s32 %s21, 1
      %s29 = ssub.s32 %s21, %s28
      %p30 = scmp.eq.s32.totalorder %s29, 0
      %s32 = sadd.s32 %s31, 1
      %s33 = scalar_select %p30, %s31, %s32
      %p36 = pneg %p30
      %p37 = scmp.eq.s32.totalorder %s21, 1
      %p38 = por %p36, %p37
      %p39 = scmp.ne.s32.totalorder %s31, %s34
      %p40 = scmp.eq.s32.totalorder %s21, 0
      %p41 = por %p39, %p40
      %p42 = scmp.ne.s32.totalorder %s31, %s34
      %p43 = scmp.eq.s32.totalorder %s26, 1
      %p44 = por %p42, %p43
      %p45 = scmp.ne.s32.totalorder %s34, %s35
      %p46 = scmp.eq.s32.totalorder %s26, 0
      %p47 = por %p45, %p46
      %p48 = scmp.ne.s32.totalorder %s34, %s35
      %p49 = scmp.eq.s32.totalorder %s27, 1
      %p50 = por %p48, %p49
      %p52 = scmp.ne.s32.totalorder %s35, %s51
      %p53 = scmp.eq.s32.totalorder %s27, 0
      %p54 = por %p52, %p53
      %s56 = sadd.s32 %s55, 1
      %p59 = scmp.eq.s32.totalorder %s21, 1
      %p60 = scmp.ne.s32.totalorder %s55, %s57
      %p61 = scmp.eq.s32.totalorder %s21, 0
      %p62 = por %p60, %p61
      %p63 = scmp.ne.s32.totalorder %s55, %s57
      %p64 = scmp.eq.s32.totalorder %s26, 1
      %p65 = por %p63, %p64
      %p66 = scmp.ne.s32.totalorder %s57, %s58
      %p67 = scmp.eq.s32.totalorder %s26, 0
      %p68 = por %p66, %p67
      %p69 = scmp.ne.s32.totalorder %s57, %s58
      %p70 = scmp.eq.s32.totalorder %s27, 1
      %p71 = por %p69, %p70
      %p73 = scmp.ne.s32.totalorder %s58, %s72
      %p74 = scmp.eq.s32.totalorder %s27, 0
      %p75 = por %p73, %p74
      %s77 = sadd.s32 %s76, 1
      %p80 = scmp.eq.s32.totalorder %s21, 1
      %p81 = scmp.ne.s32.totalorder %s76, %s78
      %p82 = scmp.eq.s32.totalorder %s21, 0
      %p83 = por %p81, %p82
      %p84 = scmp.ne.s32.totalorder %s76, %s78
      %p85 = scmp.eq.s32.totalorder %s26, 1
      %p86 = por %p84, %p85
      %p87 = scmp.ne.s32.totalorder %s78, %s79
      %p88 = scmp.eq.s32.totalorder %s26, 0
      %p89 = por %p87, %p88
      %p90 = scmp.ne.s32.totalorder %s78, %s79
      %p91 = scmp.eq.s32.totalorder %s27, 1
      %p92 = por %p90, %p91
      %p94 = scmp.ne.s32.totalorder %s79, %s93
      %p95 = scmp.eq.s32.totalorder %s27, 0
      %p96 = por %p94, %p95
      %s98 = sadd.s32 %s97, 1
      %p101 = scmp.eq.s32.totalorder %s21, 1
      %p102 = scmp.ne.s32.totalorder %s97, %s99
      %p103 = scmp.eq.s32.totalorder %s21, 0
      %p104 = por %p102, %p103
      %p105 = scmp.ne.s32.totalorder %s97, %s99
      %p106 = scmp.eq.s32.totalorder %s26, 1
      %p107 = por %p105, %p106
      %p108 = scmp.ne.s32.totalorder %s99, %s100
      %p109 = scmp.eq.s32.totalorder %s26, 0
      %p110 = por %p108, %p109
      %p111 = scmp.ne.s32.totalorder %s99, %s100
      %p112 = scmp.eq.s32.totalorder %s27, 1
      %p113 = por %p111, %p112
      %p115 = scmp.ne.s32.totalorder %s100, %s114
      %p116 = scmp.eq.s32.totalorder %s27, 0
      %p117 = por %p115, %p116
      %s119 = sadd.s32 %s118, 1
      %p122 = scmp.eq.s32.totalorder %s21, 1
      %p123 = scmp.ne.s32.totalorder %s118, %s120
      %p124 = scmp.eq.s32.totalorder %s21, 0
      %p125 = por %p123, %p124
      %p126 = scmp.ne.s32.totalorder %s118, %s120
      %p127 = scmp.eq.s32.totalorder %s26, 1
      %p128 = por %p126, %p127
      %p129 = scmp.ne.s32.totalorder %s120, %s121
      %p130 = scmp.eq.s32.totalorder %s26, 0
      %p131 = por %p129, %p130
      %p132 = scmp.ne.s32.totalorder %s120, %s121
      %p133 = scmp.eq.s32.totalorder %s27, 1
      %p134 = por %p132, %p133
      %p136 = scmp.ne.s32.totalorder %s121, %s135
      %p137 = scmp.eq.s32.totalorder %s27, 0
      %p138 = por %p136, %p137
      %s140 = sadd.s32 %s139, 1
      %p143 = scmp.eq.s32.totalorder %s21, 1
      %p144 = scmp.ne.s32.totalorder %s139, %s141
      %p145 = scmp.eq.s32.totalorder %s21, 0
      %p146 = por %p144, %p145
      %p147 = scmp.ne.s32.totalorder %s139, %s141
      %p148 = scmp.eq.s32.totalorder %s26, 1
      %p149 = por %p147, %p148
      %p150 = scmp.ne.s32.totalorder %s141, %s142
      %p151 = scmp.eq.s32.totalorder %s26, 0
      %p152 = por %p150, %p151
      %p153 = scmp.ne.s32.totalorder %s141, %s142
      %p154 = scmp.eq.s32.totalorder %s27, 1
      %p155 = por %p153, %p154
      %p157 = scmp.ne.s32.totalorder %s142, %s156
      %p158 = scmp.eq.s32.totalorder %s27, 0
      %p159 = por %p157, %p158
      %s161 = sadd.s32 %s160, 1
      %p164 = scmp.eq.s32.totalorder %s21, 1
      %p165 = scmp.ne.s32.totalorder %s160, %s162
      %p166 = scmp.eq.s32.totalorder %s21, 0
      %p167 = por %p165, %p166
      %p168 = scmp.ne.s32.totalorder %s160, %s162
      %p169 = scmp.eq.s32.totalorder %s26, 1
      %p170 = por %p168, %p169
      %p171 = scmp.ne.s32.totalorder %s162, %s163
      %p172 = scmp.eq.s32.totalorder %s26, 0
      %p173 = por %p171, %p172
      %p174 = scmp.ne.s32.totalorder %s162, %s163
      %p175 = scmp.eq.s32.totalorder %s27, 1
      %p176 = por %p174, %p175
      %p178 = scmp.ne.s32.totalorder %s163, %s177
      %p179 = scmp.eq.s32.totalorder %s27, 0
      %p180 = por %p178, %p179
      %s181 = ssub.s32 %s21, %s28
      %p182 = scmp.eq.s32.totalorder %s181, 0
      %s184 = sadd.s32 %s183, 1
      %s185 = scalar_select %p182, %s183, %s184
      %p188 = pneg %p182
      %p189 = scmp.eq.s32.totalorder %s21, 1
      %p190 = por %p188, %p189
      %p191 = scmp.ne.s32.totalorder %s183, %s186
      %p192 = scmp.eq.s32.totalorder %s21, 0
      %p193 = por %p191, %p192
      %p194 = scmp.ne.s32.totalorder %s183, %s186
      %p195 = scmp.eq.s32.totalorder %s26, 1
      %p196 = por %p194, %p195
      %p197 = scmp.ne.s32.totalorder %s186, %s187
      %p198 = scmp.eq.s32.totalorder %s26, 0
      %p199 = por %p197, %p198
      %p200 = scmp.ne.s32.totalorder %s186, %s187
      %p201 = scmp.eq.s32.totalorder %s27, 1
      %p202 = por %p200, %p201
      %p204 = scmp.ne.s32.totalorder %s187, %s203
      %p205 = scmp.eq.s32.totalorder %s27, 0
      %p206 = por %p204, %p205
      %p207 = scmp.le.s32.totalorder 1, %s21
      %p208 = scmp.lt.s32.totalorder %s21, 3
      %p209 = pnand %p207, %p208
      %p210 = pneg %p209
      // Predicated region
      $region9: #{tpu_custom_call.1} parent=5 // pred_check
        _
      $region10: #{tpu_custom_call.1} parent=5 // pred_check_branch
        %212 = sbr.rel (%p209) target = $region12
      $region11: #{tpu_custom_call.1} parent=5 // pred_region
        %s213 = ssub.s32 %s21, 1
        // Predicated region
        $region13: #{tpu_custom_call.1} parent=11 // pred_check
          %p214 = pneg %p68
        $region14: #{tpu_custom_call.1} parent=11 // pred_check_branch
          %216 = sbr.rel (%p214) target = $region16
        $region15: #{tpu_custom_call.1} parent=11 // pred_region
          %218 = vsyncadd [#allocation7], 0
          %s219 = sshll.u32 %s1, 4
          %s220 = int_to_ptr.hbm [resolvable:$true] %s219
          %s221 = sshll.u32 [#allocation6], 4
          %s222 = int_to_ptr.vmem [resolvable:$true] %s221
          %227 = dma.hbm_to_vmem [thread:$0]  %s220, 2048, %s222, [#allocation7], 128, 128, 8
        $region16: #{tpu_custom_call.1} parent=11 // pred_fallthru
          _
        // Predicated region
        $region17: #{tpu_custom_call.1} parent=11 // pred_check
          %p228 = pneg %p89
        $region18: #{tpu_custom_call.1} parent=11 // pred_check_branch
          %230 = sbr.rel (%p228) target = $region20
        $region19: #{tpu_custom_call.1} parent=11 // pred_region
          %232 = vsyncadd [#allocation7], 0
          %s233 = sshll.u32 %s2, 4
          %s234 = int_to_ptr.hbm [resolvable:$true] %s233
          %s235 = sshll.u32 [#allocation8], 4
          %s236 = int_to_ptr.vmem [resolvable:$true] %s235
          %241 = dma.hbm_to_vmem [thread:$0]  %s234, 18432, %s236, [#allocation7], 128, 128, 8
        $region20: #{tpu_custom_call.1} parent=11 // pred_fallthru
          _
        // Predicated region
        $region21: #{tpu_custom_call.1} parent=11 // pred_check
          %p242 = pneg %p110
        $region22: #{tpu_custom_call.1} parent=11 // pred_check_branch
          %244 = sbr.rel (%p242) target = $region24
        $region23: #{tpu_custom_call.1} parent=11 // pred_region
          %246 = vsyncadd [#allocation10], 0
          %s247 = sshll.u32 %s3, 4
          %s248 = int_to_ptr.hbm [resolvable:$true] %s247
          %s249 = sshll.u32 [#allocation9], 4
          %s250 = int_to_ptr.vmem [resolvable:$true] %s249
          %255 = dma.hbm_to_vmem [thread:$0]  %s248, 2048, %s250, [#allocation10], 128, 128, 8
        $region24: #{tpu_custom_call.1} parent=11 // pred_fallthru
          _
        // Predicated region
        $region25: #{tpu_custom_call.1} parent=11 // pred_check
          %p256 = pneg %p131
        $region26: #{tpu_custom_call.1} parent=11 // pred_check_branch
          %258 = sbr.rel (%p256) target = $region28
        $region27: #{tpu_custom_call.1} parent=11 // pred_region
          _
        $region28: #{tpu_custom_call.1} parent=11 // pred_fallthru
          _
        // Predicated region
        $region29: #{tpu_custom_call.1} parent=11 // pred_check
          %p259 = pneg %p152
        $region30: #{tpu_custom_call.1} parent=11 // pred_check_branch
          %261 = sbr.rel (%p259) target = $region32
        $region31: #{tpu_custom_call.1} parent=11 // pred_region
          _
        $region32: #{tpu_custom_call.1} parent=11 // pred_fallthru
          _
        // Predicated region
        $region33: #{tpu_custom_call.1} parent=11 // pred_check
          %p262 = pneg %p173
        $region34: #{tpu_custom_call.1} parent=11 // pred_check_branch
          %264 = sbr.rel (%p262) target = $region36
        $region35: #{tpu_custom_call.1} parent=11 // pred_region
          _
        $region36: #{tpu_custom_call.1} parent=11 // pred_fallthru
          _
      $region12: #{tpu_custom_call.1} parent=5 // pred_fallthru
        _
      %p265 = scmp.lt.s32.totalorder %s21, 2
      // Predicated region
      $region37: #{tpu_custom_call.1} parent=5 // pred_check
        %p266 = pneg %p265
      $region38: #{tpu_custom_call.1} parent=5 // pred_check_branch
        %268 = sbr.rel (%p266) target = $region40
      $region39: #{tpu_custom_call.1} parent=5 // pred_region
        // Predicated region
        $region41: #{tpu_custom_call.1} parent=39 // pred_check
          %p269 = pneg %p41
        $region42: #{tpu_custom_call.1} parent=39 // pred_check_branch
          %271 = sbr.rel (%p269) target = $region44
        $region43: #{tpu_custom_call.1} parent=39 // pred_region
          %s272 = sand.u32 %s31, 1
          %s273 = scalar_lea.sflag [#allocation4], %s272
          %s274 = sand.u32 %s31, 1
          %s275 = smul.addr %s274, 64
          %s276 = scalar_lea.vmem [#allocation3], %s275
          %278 = vsyncadd %s273, 0
          %s279 = smul.addr %s21, 8
          %s280 = smul.addr %s279, 8
          %s281 = scalar_lea.hbm %s0, %s280
          %s282 = sshll.u32 %s281, 4
          %s283 = int_to_ptr.hbm [resolvable:$true] %s282
          %s284 = sshll.u32 %s276, 4
          %s285 = int_to_ptr.vmem [resolvable:$true] %s284
          %290 = dma.hbm_to_vmem [thread:$0]  %s283, 1024, %s285, %s273, 128, 128, 8
        $region44: #{tpu_custom_call.1} parent=39 // pred_fallthru
          _
      $region40: #{tpu_custom_call.1} parent=5 // pred_fallthru
        _
      %p291 = scmp.le.s32.totalorder 1, %s21
      %p292 = scmp.lt.s32.totalorder %s21, 3
      %p293 = pnand %p291, %p292
      %p294 = pneg %p293
      // Predicated region
      $region45: #{tpu_custom_call.1} parent=5 // pred_check
        _
      $region46: #{tpu_custom_call.1} parent=5 // pred_check_branch
        %296 = sbr.rel (%p293) target = $region48
      $region47: #{tpu_custom_call.1} parent=5 // pred_region
        %s297 = ssub.s32 %s21, 1
        %s298 = sand.u32 %s34, 1
        %s299 = scalar_lea.sflag [#allocation4], %s298
        %s300 = sand.u32 %s34, 1
        %s301 = smul.addr %s300, 64
        %s302 = scalar_lea.vmem [#allocation3], %s301
        // Predicated region
        $region49: #{tpu_custom_call.1} parent=47 // pred_check
          %p303 = pneg %p47
        $region50: #{tpu_custom_call.1} parent=47 // pred_check_branch
          %305 = sbr.rel (%p303) target = $region52
        $region51: #{tpu_custom_call.1} parent=47 // pred_region
          %307 = dma.done %s299, 1024
        $region52: #{tpu_custom_call.1} parent=47 // pred_fallthru
          _
        // Predicated region
        $region53: #{tpu_custom_call.1} parent=47 // pred_check
          %p308 = pneg %p68
        $region54: #{tpu_custom_call.1} parent=47 // pred_check_branch
          %310 = sbr.rel (%p308) target = $region56
        $region55: #{tpu_custom_call.1} parent=47 // pred_region
          %312 = dma.done [#allocation7], 2048
        $region56: #{tpu_custom_call.1} parent=47 // pred_fallthru
          _
        // Predicated region
        $region57: #{tpu_custom_call.1} parent=47 // pred_check
          %p313 = pneg %p89
        $region58: #{tpu_custom_call.1} parent=47 // pred_check_branch
          %315 = sbr.rel (%p313) target = $region60
        $region59: #{tpu_custom_call.1} parent=47 // pred_region
          %317 = dma.done [#allocation7], 18432
        $region60: #{tpu_custom_call.1} parent=47 // pred_fallthru
          _
        // Predicated region
        $region61: #{tpu_custom_call.1} parent=47 // pred_check
          %p318 = pneg %p110
        $region62: #{tpu_custom_call.1} parent=47 // pred_check_branch
          %320 = sbr.rel (%p318) target = $region64
        $region63: #{tpu_custom_call.1} parent=47 // pred_region
          %322 = dma.done [#allocation10], 2048
        $region64: #{tpu_custom_call.1} parent=47 // pred_fallthru
          _
        %s323 = sand.u32 %s34, 1
        %s324 = scalar_lea.sflag [#allocation4], %s323
        %s325 = sand.u32 %s34, 1
        %s326 = smul.addr %s325, 64
        %s327 = scalar_lea.vmem [#allocation3], %s326
        %p328 = pneg %p47
        %p329 = pneg %p44
        %p330 = pneg %p68
        %p331 = pneg %p65
        %p332 = pneg %p89
        %p333 = pneg %p86
        %p334 = pneg %p110
        %p335 = pneg %p107
        %p336 = pneg %p131
        %p337 = pneg %p128
        %p338 = pneg %p152
        %p339 = pneg %p149
        %p340 = pneg %p173
        %p341 = pneg %p170
        %p342 = pneg %p199
        %p343 = pneg %p196
        %s344 = sand.u32 %s186, 1
        %s345 = scalar_lea.sflag [#allocation5], %s344
        %s346 = sand.u32 %s186, 1
        %s347 = smul.addr %s346, 64
        %s348 = scalar_lea.vmem [#allocation11], %s347
        %v349 = vld [vmem:[%s302] sm:$0xff]
        %v350 = vld [vmem:[%s302 + $0x8] sm:$0xff]
        %v351 = vld [vmem:[%s302 + $0x10] sm:$0xff]
        %v352 = vld [vmem:[%s302 + $0x18] sm:$0xff]
        %v353 = vld [vmem:[%s302 + $0x20] sm:$0xff]
        %v354 = vld [vmem:[%s302 + $0x28] sm:$0xff]
        %v355 = vld [vmem:[%s302 + $0x30] sm:$0xff]
        %v356 = vld [vmem:[%s302 + $0x38] sm:$0xff]
        %v357 = vld [vmem:[#allocation6] sm:$0xff]
        %v358 = vld [vmem:[#allocation6 + $0x8] sm:$0xff]
        %v359 = vld [vmem:[#allocation6 + $0x10] sm:$0xff]
        %v360 = vld [vmem:[#allocation6 + $0x18] sm:$0xff]
        %v361 = vld [vmem:[#allocation6 + $0x20] sm:$0xff]
        %v362 = vld [vmem:[#allocation6 + $0x28] sm:$0xff]
        %v363 = vld [vmem:[#allocation6 + $0x30] sm:$0xff]
        %v364 = vld [vmem:[#allocation6 + $0x38] sm:$0xff]
        %v365 = vld [vmem:[#allocation6 + $0x40] sm:$0xff]
        %v366 = vld [vmem:[#allocation6 + $0x48] sm:$0xff]
        %v367 = vld [vmem:[#allocation6 + $0x50] sm:$0xff]
        %v368 = vld [vmem:[#allocation6 + $0x58] sm:$0xff]
        %v369 = vld [vmem:[#allocation6 + $0x60] sm:$0xff]
        %v370 = vld [vmem:[#allocation6 + $0x68] sm:$0xff]
        %v371 = vld [vmem:[#allocation6 + $0x70] sm:$0xff]
        %v372 = vld [vmem:[#allocation6 + $0x78] sm:$0xff]
        %v373 = vld [vmem:[%s4] sm:$0x1]
        %v375 = vperm.slane %v373, 0
        %377 = vmatpush.msra.mxu0 %v372
        %378 = vmatpush.msra.mxu0 %v371
        %379 = vmatpush.msra.mxu0 %v370
        %380 = vmatpush.msra.mxu0 %v369
        %381 = vmatpush.msra.mxu0 %v368
        %382 = vmatpush.msra.mxu0 %v367
        %383 = vmatpush.msra.mxu0 %v366
        %384 = vmatpush.msra.mxu0 %v365
        %385 = vmatpush.msra.mxu0 %v364
        %386 = vmatpush.msra.mxu0 %v363
        %387 = vmatpush.msra.mxu0 %v362
        %388 = vmatpush.msra.mxu0 %v361
        %389 = vmatpush.msra.mxu0 %v360
        %390 = vmatpush.msra.mxu0 %v359
        %391 = vmatpush.msra.mxu0 %v358
        %392 = vmatpush.msra.mxu0 %v357
        %393 = vmatmul.f32.gmra.mxu0 %v349
        %v394 = vpop.f32.mrf.mxu0
        %v395 = vadd.f32 %v375, %v394
        %396 = vmatmul.f32.gmra.mxu0 %v350
        %v397 = vpop.f32.mrf.mxu0
        %v398 = vadd.f32 %v375, %v397
        %399 = vmatmul.f32.gmra.mxu0 %v351
        %v400 = vpop.f32.mrf.mxu0
        %v401 = vadd.f32 %v375, %v400
        %402 = vmatmul.f32.gmra.mxu0 %v352
        %v403 = vpop.f32.mrf.mxu0
        %v404 = vadd.f32 %v375, %v403
        %405 = vmatmul.f32.gmra.mxu0 %v353
        %v406 = vpop.f32.mrf.mxu0
        %v407 = vadd.f32 %v375, %v406
        %408 = vmatmul.f32.gmra.mxu0 %v354
        %v409 = vpop.f32.mrf.mxu0
        %v410 = vadd.f32 %v375, %v409
        %411 = vmatmul.f32.gmra.mxu0 %v355
        %v412 = vpop.f32.mrf.mxu0
        %v413 = vadd.f32 %v375, %v412
        %414 = vmatmul.f32.gmra.mxu0 %v356
        %v415 = vpop.f32.mrf.mxu0
        %v416 = vadd.f32 %v375, %v415
        %417 = vdwg.mxu0
        %v418 = vmax.f32 %v395, 0.0
        %v419 = vmax.f32 %v398, 0.0
        %v420 = vmax.f32 %v401, 0.0
        %v421 = vmax.f32 %v404, 0.0
        %v422 = vmax.f32 %v407, 0.0
        %v423 = vmax.f32 %v410, 0.0
        %v424 = vmax.f32 %v413, 0.0
        %v425 = vmax.f32 %v416, 0.0
        %426 = vst [vmem:[#allocation2] sm:$0xff] 0.0
        %427 = vst [vmem:[#allocation2 + $0x8] sm:$0x3] 0.0
        %s428 = scalar_lea.vmem [#allocation2], 144
        %429 = vst [vmem:[%s428] sm:$0xff] 0.0
        %430 = vst [vmem:[%s428 + $0x8] sm:$0x3] 0.0
        %431 = vst [vmem:[#allocation2] sm:$0x1] 0.0
        %432 = vst [vmem:[#allocation2 + $0x10] sm:$0x1] 0.0
        %433 = vst [vmem:[#allocation2 + $0x20] sm:$0x1] 0.0
        %434 = vst [vmem:[#allocation2 + $0x30] sm:$0x1] 0.0
        %435 = vst [vmem:[#allocation2 + $0x40] sm:$0x1] 0.0
        %436 = vst [vmem:[#allocation2 + $0x50] sm:$0x1] 0.0
        %437 = vst [vmem:[#allocation2 + $0x60] sm:$0x1] 0.0
        %438 = vst [vmem:[#allocation2 + $0x70] sm:$0x1] 0.0
        %439 = vst [vmem:[#allocation2 + $0x80] sm:$0x1] 0.0
        %440 = vst [vmem:[#allocation2 + $0x90] sm:$0x1] 0.0
        %441 = vst [vmem:[#allocation2 + $0x9] sm:$0x1] 0.0
        %442 = vst [vmem:[#allocation2 + $0x19] sm:$0x1] 0.0
        %443 = vst [vmem:[#allocation2 + $0x29] sm:$0x1] 0.0
        %444 = vst [vmem:[#allocation2 + $0x39] sm:$0x1] 0.0
        %445 = vst [vmem:[#allocation2 + $0x49] sm:$0x1] 0.0
        %446 = vst [vmem:[#allocation2 + $0x59] sm:$0x1] 0.0
        %447 = vst [vmem:[#allocation2 + $0x69] sm:$0x1] 0.0
        %448 = vst [vmem:[#allocation2 + $0x79] sm:$0x1] 0.0
        %449 = vst [vmem:[#allocation2 + $0x89] sm:$0x1] 0.0
        %450 = vst [vmem:[#allocation2 + $0x99] sm:$0x1] 0.0
        %s451 = scalar_lea.vmem [#allocation2], 16
        %452 = vst [vmem:[%s451 + $0x1] sm:$0xff] %v418
        %453 = vst [vmem:[%s451 + $0x11] sm:$0xff] %v419
        %454 = vst [vmem:[%s451 + $0x21] sm:$0xff] %v420
        %455 = vst [vmem:[%s451 + $0x31] sm:$0xff] %v421
        %456 = vst [vmem:[%s451 + $0x41] sm:$0xff] %v422
        %457 = vst [vmem:[%s451 + $0x51] sm:$0xff] %v423
        %458 = vst [vmem:[%s451 + $0x61] sm:$0xff] %v424
        %459 = vst [vmem:[%s451 + $0x71] sm:$0xff] %v425
        %v460 = vld [vmem:[#allocation2] sm:$0xff]
        %v461 = vld [vmem:[#allocation2 + $0x10] sm:$0xff]
        %v462 = vld [vmem:[#allocation2 + $0x20] sm:$0xff]
        %v463 = vld [vmem:[#allocation2 + $0x30] sm:$0xff]
        %v464 = vld [vmem:[#allocation2 + $0x40] sm:$0xff]
        %v465 = vld [vmem:[#allocation2 + $0x50] sm:$0xff]
        %v466 = vld [vmem:[#allocation2 + $0x60] sm:$0xff]
        %v467 = vld [vmem:[#allocation2 + $0x70] sm:$0xff]
        %v468 = vld [vmem:[#allocation8] sm:$0xff]
        %v469 = vld [vmem:[#allocation8 + $0x8] sm:$0xff]
        %v470 = vld [vmem:[#allocation8 + $0x10] sm:$0xff]
        %v471 = vld [vmem:[#allocation8 + $0x18] sm:$0xff]
        %v472 = vld [vmem:[#allocation8 + $0x20] sm:$0xff]
        %v473 = vld [vmem:[#allocation8 + $0x28] sm:$0xff]
        %v474 = vld [vmem:[#allocation8 + $0x30] sm:$0xff]
        %v475 = vld [vmem:[#allocation8 + $0x38] sm:$0xff]
        %v476 = vld [vmem:[#allocation8 + $0x40] sm:$0xff]
        %v477 = vld [vmem:[#allocation8 + $0x48] sm:$0xff]
        %v478 = vld [vmem:[#allocation8 + $0x50] sm:$0xff]
        %v479 = vld [vmem:[#allocation8 + $0x58] sm:$0xff]
        %v480 = vld [vmem:[#allocation8 + $0x60] sm:$0xff]
        %v481 = vld [vmem:[#allocation8 + $0x68] sm:$0xff]
        %v482 = vld [vmem:[#allocation8 + $0x70] sm:$0xff]
        %v483 = vld [vmem:[#allocation8 + $0x78] sm:$0xff]
        %v484 = vld [vmem:[#allocation2 + $0x1] sm:$0xff]
        %v485 = vld [vmem:[#allocation2 + $0x11] sm:$0xff]
        %v486 = vld [vmem:[#allocation2 + $0x21] sm:$0xff]
        %v487 = vld [vmem:[#allocation2 + $0x31] sm:$0xff]
        %v488 = vld [vmem:[#allocation2 + $0x41] sm:$0xff]
        %v489 = vld [vmem:[#allocation2 + $0x51] sm:$0xff]
        %v490 = vld [vmem:[#allocation2 + $0x61] sm:$0xff]
        %v491 = vld [vmem:[#allocation2 + $0x71] sm:$0xff]
        %s492 = scalar_lea.vmem [#allocation8], 128
        %v493 = vld [vmem:[%s492] sm:$0xff]
        %v494 = vld [vmem:[%s492 + $0x8] sm:$0xff]
        %v495 = vld [vmem:[%s492 + $0x10] sm:$0xff]
        %v496 = vld [vmem:[%s492 + $0x18] sm:$0xff]
        %v497 = vld [vmem:[%s492 + $0x20] sm:$0xff]
        %v498 = vld [vmem:[%s492 + $0x28] sm:$0xff]
        %v499 = vld [vmem:[%s492 + $0x30] sm:$0xff]
        %v500 = vld [vmem:[%s492 + $0x38] sm:$0xff]
        %v501 = vld [vmem:[%s492 + $0x40] sm:$0xff]
        %v502 = vld [vmem:[%s492 + $0x48] sm:$0xff]
        %v503 = vld [vmem:[%s492 + $0x50] sm:$0xff]
        %v504 = vld [vmem:[%s492 + $0x58] sm:$0xff]
        %v505 = vld [vmem:[%s492 + $0x60] sm:$0xff]
        %v506 = vld [vmem:[%s492 + $0x68] sm:$0xff]
        %v507 = vld [vmem:[%s492 + $0x70] sm:$0xff]
        %v508 = vld [vmem:[%s492 + $0x78] sm:$0xff]
        %509 = vmatpush.msra.mxu0 %v508
        %510 = vmatpush.msra.mxu0 %v507
        %511 = vmatpush.msra.mxu0 %v506
        %512 = vmatpush.msra.mxu0 %v505
        %513 = vmatpush.msra.mxu0 %v504
        %514 = vmatpush.msra.mxu0 %v503
        %515 = vmatpush.msra.mxu0 %v502
        %516 = vmatpush.msra.mxu0 %v501
        %517 = vmatpush.msra.mxu0 %v500
        %518 = vmatpush.msra.mxu0 %v499
        %519 = vmatpush.msra.mxu0 %v498
        %520 = vmatpush.msra.mxu0 %v497
        %521 = vmatpush.msra.mxu0 %v496
        %522 = vmatpush.msra.mxu0 %v495
        %523 = vmatpush.msra.mxu0 %v494
        %524 = vmatpush.msra.mxu0 %v493
        %525 = vmatmul.f32.gmra.mxu0 %v484
        %v526 = vpop.f32.mrf.mxu0
        %v527 = vadd.f32 0.0, %v526
        %528 = vmatmul.f32.gmra.mxu0 %v485
        %v529 = vpop.f32.mrf.mxu0
        %v530 = vadd.f32 0.0, %v529
        %531 = vmatmul.f32.gmra.mxu0 %v486
        %v532 = vpop.f32.mrf.mxu0
        %v533 = vadd.f32 0.0, %v532
        %534 = vmatmul.f32.gmra.mxu0 %v487
        %v535 = vpop.f32.mrf.mxu0
        %v536 = vadd.f32 0.0, %v535
        %537 = vmatmul.f32.gmra.mxu0 %v488
        %v538 = vpop.f32.mrf.mxu0
        %v539 = vadd.f32 0.0, %v538
        %540 = vmatmul.f32.gmra.mxu0 %v489
        %v541 = vpop.f32.mrf.mxu0
        %v542 = vadd.f32 0.0, %v541
        %543 = vmatmul.f32.gmra.mxu0 %v490
        %v544 = vpop.f32.mrf.mxu0
        %v545 = vadd.f32 0.0, %v544
        %546 = vmatmul.f32.gmra.mxu0 %v491
        %v547 = vpop.f32.mrf.mxu0
        %v548 = vadd.f32 0.0, %v547
        %549 = vdwg.mxu0
        %550 = vmatpush.msra.mxu0 %v483
        %551 = vmatpush.msra.mxu0 %v482
        %552 = vmatpush.msra.mxu0 %v481
        %553 = vmatpush.msra.mxu0 %v480
        %554 = vmatpush.msra.mxu0 %v479
        %555 = vmatpush.msra.mxu0 %v478
        %556 = vmatpush.msra.mxu0 %v477
        %557 = vmatpush.msra.mxu0 %v476
        %558 = vmatpush.msra.mxu0 %v475
        %559 = vmatpush.msra.mxu0 %v474
        %560 = vmatpush.msra.mxu0 %v473
        %561 = vmatpush.msra.mxu0 %v472
        %562 = vmatpush.msra.mxu0 %v471
        %563 = vmatpush.msra.mxu0 %v470
        %564 = vmatpush.msra.mxu0 %v469
        %565 = vmatpush.msra.mxu0 %v468
        %566 = vmatmul.f32.gmra.mxu0 %v460
        %v567 = vpop.f32.mrf.mxu0
        %v568 = vadd.f32 %v527, %v567
        %569 = vmatmul.f32.gmra.mxu0 %v461
        %v570 = vpop.f32.mrf.mxu0
        %v571 = vadd.f32 %v530, %v570
        %572 = vmatmul.f32.gmra.mxu0 %v462
        %v573 = vpop.f32.mrf.mxu0
        %v574 = vadd.f32 %v533, %v573
        %575 = vmatmul.f32.gmra.mxu0 %v463
        %v576 = vpop.f32.mrf.mxu0
        %v577 = vadd.f32 %v536, %v576
        %578 = vmatmul.f32.gmra.mxu0 %v464
        %v579 = vpop.f32.mrf.mxu0
        %v580 = vadd.f32 %v539, %v579
        %581 = vmatmul.f32.gmra.mxu0 %v465
        %v582 = vpop.f32.mrf.mxu0
        %v583 = vadd.f32 %v542, %v582
        %584 = vmatmul.f32.gmra.mxu0 %v466
        %v585 = vpop.f32.mrf.mxu0
        %v586 = vadd.f32 %v545, %v585
        %587 = vmatmul.f32.gmra.mxu0 %v467
        %v588 = vpop.f32.mrf.mxu0
        %v589 = vadd.f32 %v548, %v588
        %590 = vdwg.mxu0
        %v591 = vld [vmem:[#allocation2 + $0x2] sm:$0xff]
        %v592 = vld [vmem:[#allocation2 + $0x12] sm:$0xff]
        %v593 = vld [vmem:[#allocation2 + $0x22] sm:$0xff]
        %v594 = vld [vmem:[#allocation2 + $0x32] sm:$0xff]
        %v595 = vld [vmem:[#allocation2 + $0x42] sm:$0xff]
        %v596 = vld [vmem:[#allocation2 + $0x52] sm:$0xff]
        %v597 = vld [vmem:[#allocation2 + $0x62] sm:$0xff]
        %v598 = vld [vmem:[#allocation2 + $0x72] sm:$0xff]
        %s599 = scalar_lea.vmem [#allocation8], 256
        %v600 = vld [vmem:[%s599] sm:$0xff]
        %v601 = vld [vmem:[%s599 + $0x8] sm:$0xff]
        %v602 = vld [vmem:[%s599 + $0x10] sm:$0xff]
        %v603 = vld [vmem:[%s599 + $0x18] sm:$0xff]
        %v604 = vld [vmem:[%s599 + $0x20] sm:$0xff]
        %v605 = vld [vmem:[%s599 + $0x28] sm:$0xff]
        %v606 = vld [vmem:[%s599 + $0x30] sm:$0xff]
        %v607 = vld [vmem:[%s599 + $0x38] sm:$0xff]
        %v608 = vld [vmem:[%s599 + $0x40] sm:$0xff]
        %v609 = vld [vmem:[%s599 + $0x48] sm:$0xff]
        %v610 = vld [vmem:[%s599 + $0x50] sm:$0xff]
        %v611 = vld [vmem:[%s599 + $0x58] sm:$0xff]
        %v612 = vld [vmem:[%s599 + $0x60] sm:$0xff]
        %v613 = vld [vmem:[%s599 + $0x68] sm:$0xff]
        %v614 = vld [vmem:[%s599 + $0x70] sm:$0xff]
        %v615 = vld [vmem:[%s599 + $0x78] sm:$0xff]
        %616 = vmatpush.msra.mxu0 %v615
        %617 = vmatpush.msra.mxu0 %v614
        %618 = vmatpush.msra.mxu0 %v613
        %619 = vmatpush.msra.mxu0 %v612
        %620 = vmatpush.msra.mxu0 %v611
        %621 = vmatpush.msra.mxu0 %v610
        %622 = vmatpush.msra.mxu0 %v609
        %623 = vmatpush.msra.mxu0 %v608
        %624 = vmatpush.msra.mxu0 %v607
        %625 = vmatpush.msra.mxu0 %v606
        %626 = vmatpush.msra.mxu0 %v605
        %627 = vmatpush.msra.mxu0 %v604
        %628 = vmatpush.msra.mxu0 %v603
        %629 = vmatpush.msra.mxu0 %v602
        %630 = vmatpush.msra.mxu0 %v601
        %631 = vmatpush.msra.mxu0 %v600
        %632 = vmatmul.f32.gmra.mxu0 %v591
        %v633 = vpop.f32.mrf.mxu0
        %v634 = vadd.f32 0.0, %v633
        %635 = vmatmul.f32.gmra.mxu0 %v592
        %v636 = vpop.f32.mrf.mxu0
        %v637 = vadd.f32 0.0, %v636
        %638 = vmatmul.f32.gmra.mxu0 %v593
        %v639 = vpop.f32.mrf.mxu0
        %v640 = vadd.f32 0.0, %v639
        %641 = vmatmul.f32.gmra.mxu0 %v594
        %v642 = vpop.f32.mrf.mxu0
        %v643 = vadd.f32 0.0, %v642
        %644 = vmatmul.f32.gmra.mxu0 %v595
        %v645 = vpop.f32.mrf.mxu0
        %v646 = vadd.f32 0.0, %v645
        %647 = vmatmul.f32.gmra.mxu0 %v596
        %v648 = vpop.f32.mrf.mxu0
        %v649 = vadd.f32 0.0, %v648
        %650 = vmatmul.f32.gmra.mxu0 %v597
        %v651 = vpop.f32.mrf.mxu0
        %v652 = vadd.f32 0.0, %v651
        %653 = vmatmul.f32.gmra.mxu0 %v598
        %v654 = vpop.f32.mrf.mxu0
        %v655 = vadd.f32 0.0, %v654
        %656 = vdwg.mxu0
        %v657 = vadd.f32 %v568, %v634
        %v658 = vadd.f32 %v571, %v637
        %v659 = vadd.f32 %v574, %v640
        %v660 = vadd.f32 %v577, %v643
        %v661 = vadd.f32 %v580, %v646
        %v662 = vadd.f32 %v583, %v649
        %v663 = vadd.f32 %v586, %v652
        %v664 = vadd.f32 %v589, %v655
        %v665 = vld [vmem:[%s451] sm:$0xff]
        %v666 = vld [vmem:[%s451 + $0x10] sm:$0xff]
        %v667 = vld [vmem:[%s451 + $0x20] sm:$0xff]
        %v668 = vld [vmem:[%s451 + $0x30] sm:$0xff]
        %v669 = vld [vmem:[%s451 + $0x40] sm:$0xff]
        %v670 = vld [vmem:[%s451 + $0x50] sm:$0xff]
        %v671 = vld [vmem:[%s451 + $0x60] sm:$0xff]
        %v672 = vld [vmem:[%s451 + $0x70] sm:$0xff]
        %s673 = scalar_lea.vmem [#allocation8], 384
        %v674 = vld [vmem:[%s673] sm:$0xff]
        %v675 = vld [vmem:[%s673 + $0x8] sm:$0xff]
        %v676 = vld [vmem:[%s673 + $0x10] sm:$0xff]
        %v677 = vld [vmem:[%s673 + $0x18] sm:$0xff]
        %v678 = vld [vmem:[%s673 + $0x20] sm:$0xff]
        %v679 = vld [vmem:[%s673 + $0x28] sm:$0xff]
        %v680 = vld [vmem:[%s673 + $0x30] sm:$0xff]
        %v681 = vld [vmem:[%s673 + $0x38] sm:$0xff]
        %v682 = vld [vmem:[%s673 + $0x40] sm:$0xff]
        %v683 = vld [vmem:[%s673 + $0x48] sm:$0xff]
        %v684 = vld [vmem:[%s673 + $0x50] sm:$0xff]
        %v685 = vld [vmem:[%s673 + $0x58] sm:$0xff]
        %v686 = vld [vmem:[%s673 + $0x60] sm:$0xff]
        %v687 = vld [vmem:[%s673 + $0x68] sm:$0xff]
        %v688 = vld [vmem:[%s673 + $0x70] sm:$0xff]
        %v689 = vld [vmem:[%s673 + $0x78] sm:$0xff]
        %690 = vmatpush.msra.mxu0 %v689
        %691 = vmatpush.msra.mxu0 %v688
        %692 = vmatpush.msra.mxu0 %v687
        %693 = vmatpush.msra.mxu0 %v686
        %694 = vmatpush.msra.mxu0 %v685
        %695 = vmatpush.msra.mxu0 %v684
        %696 = vmatpush.msra.mxu0 %v683
        %697 = vmatpush.msra.mxu0 %v682
        %698 = vmatpush.msra.mxu0 %v681
        %699 = vmatpush.msra.mxu0 %v680
        %700 = vmatpush.msra.mxu0 %v679
        %701 = vmatpush.msra.mxu0 %v678
        %702 = vmatpush.msra.mxu0 %v677
        %703 = vmatpush.msra.mxu0 %v676
        %704 = vmatpush.msra.mxu0 %v675
        %705 = vmatpush.msra.mxu0 %v674
        %706 = vmatmul.f32.gmra.mxu0 %v665
        %v707 = vpop.f32.mrf.mxu0
        %v708 = vadd.f32 0.0, %v707
        %709 = vmatmul.f32.gmra.mxu0 %v666
        %v710 = vpop.f32.mrf.mxu0
        %v711 = vadd.f32 0.0, %v710
        %712 = vmatmul.f32.gmra.mxu0 %v667
        %v713 = vpop.f32.mrf.mxu0
        %v714 = vadd.f32 0.0, %v713
        %715 = vmatmul.f32.gmra.mxu0 %v668
        %v716 = vpop.f32.mrf.mxu0
        %v717 = vadd.f32 0.0, %v716
        %718 = vmatmul.f32.gmra.mxu0 %v669
        %v719 = vpop.f32.mrf.mxu0
        %v720 = vadd.f32 0.0, %v719
        %721 = vmatmul.f32.gmra.mxu0 %v670
        %v722 = vpop.f32.mrf.mxu0
        %v723 = vadd.f32 0.0, %v722
        %724 = vmatmul.f32.gmra.mxu0 %v671
        %v725 = vpop.f32.mrf.mxu0
        %v726 = vadd.f32 0.0, %v725
        %727 = vmatmul.f32.gmra.mxu0 %v672
        %v728 = vpop.f32.mrf.mxu0
        %v729 = vadd.f32 0.0, %v728
        %730 = vdwg.mxu0
        %v731 = vadd.f32 %v657, %v708
        %v732 = vadd.f32 %v658, %v711
        %v733 = vadd.f32 %v659, %v714
        %v734 = vadd.f32 %v660, %v717
        %v735 = vadd.f32 %v661, %v720
        %v736 = vadd.f32 %v662, %v723
        %v737 = vadd.f32 %v663, %v726
        %v738 = vadd.f32 %v664, %v729
        %v739 = vld [vmem:[%s451 + $0x1] sm:$0xff]
        %v740 = vld [vmem:[%s451 + $0x11] sm:$0xff]
        %v741 = vld [vmem:[%s451 + $0x21] sm:$0xff]
        %v742 = vld [vmem:[%s451 + $0x31] sm:$0xff]
        %v743 = vld [vmem:[%s451 + $0x41] sm:$0xff]
        %v744 = vld [vmem:[%s451 + $0x51] sm:$0xff]
        %v745 = vld [vmem:[%s451 + $0x61] sm:$0xff]
        %v746 = vld [vmem:[%s451 + $0x71] sm:$0xff]
        %s747 = scalar_lea.vmem [#allocation8], 512
        %v748 = vld [vmem:[%s747] sm:$0xff]
        %v749 = vld [vmem:[%s747 + $0x8] sm:$0xff]
        %v750 = vld [vmem:[%s747 + $0x10] sm:$0xff]
        %v751 = vld [vmem:[%s747 + $0x18] sm:$0xff]
        %v752 = vld [vmem:[%s747 + $0x20] sm:$0xff]
        %v753 = vld [vmem:[%s747 + $0x28] sm:$0xff]
        %v754 = vld [vmem:[%s747 + $0x30] sm:$0xff]
        %v755 = vld [vmem:[%s747 + $0x38] sm:$0xff]
        %v756 = vld [vmem:[%s747 + $0x40] sm:$0xff]
        %v757 = vld [vmem:[%s747 + $0x48] sm:$0xff]
        %v758 = vld [vmem:[%s747 + $0x50] sm:$0xff]
        %v759 = vld [vmem:[%s747 + $0x58] sm:$0xff]
        %v760 = vld [vmem:[%s747 + $0x60] sm:$0xff]
        %v761 = vld [vmem:[%s747 + $0x68] sm:$0xff]
        %v762 = vld [vmem:[%s747 + $0x70] sm:$0xff]
        %v763 = vld [vmem:[%s747 + $0x78] sm:$0xff]
        %764 = vmatpush.msra.mxu0 %v763
        %765 = vmatpush.msra.mxu0 %v762
        %766 = vmatpush.msra.mxu0 %v761
        %767 = vmatpush.msra.mxu0 %v760
        %768 = vmatpush.msra.mxu0 %v759
        %769 = vmatpush.msra.mxu0 %v758
        %770 = vmatpush.msra.mxu0 %v757
        %771 = vmatpush.msra.mxu0 %v756
        %772 = vmatpush.msra.mxu0 %v755
        %773 = vmatpush.msra.mxu0 %v754
        %774 = vmatpush.msra.mxu0 %v753
        %775 = vmatpush.msra.mxu0 %v752
        %776 = vmatpush.msra.mxu0 %v751
        %777 = vmatpush.msra.mxu0 %v750
        %778 = vmatpush.msra.mxu0 %v749
        %779 = vmatpush.msra.mxu0 %v748
        %780 = vmatmul.f32.gmra.mxu0 %v739
        %v781 = vpop.f32.mrf.mxu0
        %v782 = vadd.f32 0.0, %v781
        %783 = vmatmul.f32.gmra.mxu0 %v740
        %v784 = vpop.f32.mrf.mxu0
        %v785 = vadd.f32 0.0, %v784
        %786 = vmatmul.f32.gmra.mxu0 %v741
        %v787 = vpop.f32.mrf.mxu0
        %v788 = vadd.f32 0.0, %v787
        %789 = vmatmul.f32.gmra.mxu0 %v742
        %v790 = vpop.f32.mrf.mxu0
        %v791 = vadd.f32 0.0, %v790
        %792 = vmatmul.f32.gmra.mxu0 %v743
        %v793 = vpop.f32.mrf.mxu0
        %v794 = vadd.f32 0.0, %v793
        %795 = vmatmul.f32.gmra.mxu0 %v744
        %v796 = vpop.f32.mrf.mxu0
        %v797 = vadd.f32 0.0, %v796
        %798 = vmatmul.f32.gmra.mxu0 %v745
        %v799 = vpop.f32.mrf.mxu0
        %v800 = vadd.f32 0.0, %v799
        %801 = vmatmul.f32.gmra.mxu0 %v746
        %v802 = vpop.f32.mrf.mxu0
        %v803 = vadd.f32 0.0, %v802
        %804 = vdwg.mxu0
        %v805 = vadd.f32 %v731, %v782
        %v806 = vadd.f32 %v732, %v785
        %v807 = vadd.f32 %v733, %v788
        %v808 = vadd.f32 %v734, %v791
        %v809 = vadd.f32 %v735, %v794
        %v810 = vadd.f32 %v736, %v797
        %v811 = vadd.f32 %v737, %v800
        %v812 = vadd.f32 %v738, %v803
        %v813 = vld [vmem:[%s451 + $0x2] sm:$0xff]
        %v814 = vld [vmem:[%s451 + $0x12] sm:$0xff]
        %v815 = vld [vmem:[%s451 + $0x22] sm:$0xff]
        %v816 = vld [vmem:[%s451 + $0x32] sm:$0xff]
        %v817 = vld [vmem:[%s451 + $0x42] sm:$0xff]
        %v818 = vld [vmem:[%s451 + $0x52] sm:$0xff]
        %v819 = vld [vmem:[%s451 + $0x62] sm:$0xff]
        %v820 = vld [vmem:[%s451 + $0x72] sm:$0xff]
        %s821 = scalar_lea.vmem [#allocation8], 640
        %v822 = vld [vmem:[%s821] sm:$0xff]
        %v823 = vld [vmem:[%s821 + $0x8] sm:$0xff]
        %v824 = vld [vmem:[%s821 + $0x10] sm:$0xff]
        %v825 = vld [vmem:[%s821 + $0x18] sm:$0xff]
        %v826 = vld [vmem:[%s821 + $0x20] sm:$0xff]
        %v827 = vld [vmem:[%s821 + $0x28] sm:$0xff]
        %v828 = vld [vmem:[%s821 + $0x30] sm:$0xff]
        %v829 = vld [vmem:[%s821 + $0x38] sm:$0xff]
        %v830 = vld [vmem:[%s821 + $0x40] sm:$0xff]
        %v831 = vld [vmem:[%s821 + $0x48] sm:$0xff]
        %v832 = vld [vmem:[%s821 + $0x50] sm:$0xff]
        %v833 = vld [vmem:[%s821 + $0x58] sm:$0xff]
        %v834 = vld [vmem:[%s821 + $0x60] sm:$0xff]
        %v835 = vld [vmem:[%s821 + $0x68] sm:$0xff]
        %v836 = vld [vmem:[%s821 + $0x70] sm:$0xff]
        %v837 = vld [vmem:[%s821 + $0x78] sm:$0xff]
        %838 = vmatpush.msra.mxu0 %v837
        %839 = vmatpush.msra.mxu0 %v836
        %840 = vmatpush.msra.mxu0 %v835
        %841 = vmatpush.msra.mxu0 %v834
        %842 = vmatpush.msra.mxu0 %v833
        %843 = vmatpush.msra.mxu0 %v832
        %844 = vmatpush.msra.mxu0 %v831
        %845 = vmatpush.msra.mxu0 %v830
        %846 = vmatpush.msra.mxu0 %v829
        %847 = vmatpush.msra.mxu0 %v828
        %848 = vmatpush.msra.mxu0 %v827
        %849 = vmatpush.msra.mxu0 %v826
        %850 = vmatpush.msra.mxu0 %v825
        %851 = vmatpush.msra.mxu0 %v824
        %852 = vmatpush.msra.mxu0 %v823
        %853 = vmatpush.msra.mxu0 %v822
        %854 = vmatmul.f32.gmra.mxu0 %v813
        %v855 = vpop.f32.mrf.mxu0
        %v856 = vadd.f32 0.0, %v855
        %857 = vmatmul.f32.gmra.mxu0 %v814
        %v858 = vpop.f32.mrf.mxu0
        %v859 = vadd.f32 0.0, %v858
        %860 = vmatmul.f32.gmra.mxu0 %v815
        %v861 = vpop.f32.mrf.mxu0
        %v862 = vadd.f32 0.0, %v861
        %863 = vmatmul.f32.gmra.mxu0 %v816
        %v864 = vpop.f32.mrf.mxu0
        %v865 = vadd.f32 0.0, %v864
        %866 = vmatmul.f32.gmra.mxu0 %v817
        %v867 = vpop.f32.mrf.mxu0
        %v868 = vadd.f32 0.0, %v867
        %869 = vmatmul.f32.gmra.mxu0 %v818
        %v870 = vpop.f32.mrf.mxu0
        %v871 = vadd.f32 0.0, %v870
        %872 = vmatmul.f32.gmra.mxu0 %v819
        %v873 = vpop.f32.mrf.mxu0
        %v874 = vadd.f32 0.0, %v873
        %875 = vmatmul.f32.gmra.mxu0 %v820
        %v876 = vpop.f32.mrf.mxu0
        %v877 = vadd.f32 0.0, %v876
        %878 = vdwg.mxu0
        %v879 = vadd.f32 %v805, %v856
        %v880 = vadd.f32 %v806, %v859
        %v881 = vadd.f32 %v807, %v862
        %v882 = vadd.f32 %v808, %v865
        %v883 = vadd.f32 %v809, %v868
        %v884 = vadd.f32 %v810, %v871
        %v885 = vadd.f32 %v811, %v874
        %v886 = vadd.f32 %v812, %v877
        %s887 = scalar_lea.vmem [#allocation2], 32
        %v888 = vld [vmem:[%s887] sm:$0xff]
        %v889 = vld [vmem:[%s887 + $0x10] sm:$0xff]
        %v890 = vld [vmem:[%s887 + $0x20] sm:$0xff]
        %v891 = vld [vmem:[%s887 + $0x30] sm:$0xff]
        %v892 = vld [vmem:[%s887 + $0x40] sm:$0xff]
        %v893 = vld [vmem:[%s887 + $0x50] sm:$0xff]
        %v894 = vld [vmem:[%s887 + $0x60] sm:$0xff]
        %v895 = vld [vmem:[%s887 + $0x70] sm:$0xff]
        %s896 = scalar_lea.vmem [#allocation8], 768
        %v897 = vld [vmem:[%s896] sm:$0xff]
        %v898 = vld [vmem:[%s896 + $0x8] sm:$0xff]
        %v899 = vld [vmem:[%s896 + $0x10] sm:$0xff]
        %v900 = vld [vmem:[%s896 + $0x18] sm:$0xff]
        %v901 = vld [vmem:[%s896 + $0x20] sm:$0xff]
        %v902 = vld [vmem:[%s896 + $0x28] sm:$0xff]
        %v903 = vld [vmem:[%s896 + $0x30] sm:$0xff]
        %v904 = vld [vmem:[%s896 + $0x38] sm:$0xff]
        %v905 = vld [vmem:[%s896 + $0x40] sm:$0xff]
        %v906 = vld [vmem:[%s896 + $0x48] sm:$0xff]
        %v907 = vld [vmem:[%s896 + $0x50] sm:$0xff]
        %v908 = vld [vmem:[%s896 + $0x58] sm:$0xff]
        %v909 = vld [vmem:[%s896 + $0x60] sm:$0xff]
        %v910 = vld [vmem:[%s896 + $0x68] sm:$0xff]
        %v911 = vld [vmem:[%s896 + $0x70] sm:$0xff]
        %v912 = vld [vmem:[%s896 + $0x78] sm:$0xff]
        %913 = vmatpush.msra.mxu0 %v912
        %914 = vmatpush.msra.mxu0 %v911
        %915 = vmatpush.msra.mxu0 %v910
        %916 = vmatpush.msra.mxu0 %v909
        %917 = vmatpush.msra.mxu0 %v908
        %918 = vmatpush.msra.mxu0 %v907
        %919 = vmatpush.msra.mxu0 %v906
        %920 = vmatpush.msra.mxu0 %v905
        %921 = vmatpush.msra.mxu0 %v904
        %922 = vmatpush.msra.mxu0 %v903
        %923 = vmatpush.msra.mxu0 %v902
        %924 = vmatpush.msra.mxu0 %v901
        %925 = vmatpush.msra.mxu0 %v900
        %926 = vmatpush.msra.mxu0 %v899
        %927 = vmatpush.msra.mxu0 %v898
        %928 = vmatpush.msra.mxu0 %v897
        %929 = vmatmul.f32.gmra.mxu0 %v888
        %v930 = vpop.f32.mrf.mxu0
        %v931 = vadd.f32 0.0, %v930
        %932 = vmatmul.f32.gmra.mxu0 %v889
        %v933 = vpop.f32.mrf.mxu0
        %v934 = vadd.f32 0.0, %v933
        %935 = vmatmul.f32.gmra.mxu0 %v890
        %v936 = vpop.f32.mrf.mxu0
        %v937 = vadd.f32 0.0, %v936
        %938 = vmatmul.f32.gmra.mxu0 %v891
        %v939 = vpop.f32.mrf.mxu0
        %v940 = vadd.f32 0.0, %v939
        %941 = vmatmul.f32.gmra.mxu0 %v892
        %v942 = vpop.f32.mrf.mxu0
        %v943 = vadd.f32 0.0, %v942
        %944 = vmatmul.f32.gmra.mxu0 %v893
        %v945 = vpop.f32.mrf.mxu0
        %v946 = vadd.f32 0.0, %v945
        %947 = vmatmul.f32.gmra.mxu0 %v894
        %v948 = vpop.f32.mrf.mxu0
        %v949 = vadd.f32 0.0, %v948
        %950 = vmatmul.f32.gmra.mxu0 %v895
        %v951 = vpop.f32.mrf.mxu0
        %v952 = vadd.f32 0.0, %v951
        %953 = vdwg.mxu0
        %v954 = vadd.f32 %v879, %v931
        %v955 = vadd.f32 %v880, %v934
        %v956 = vadd.f32 %v881, %v937
        %v957 = vadd.f32 %v882, %v940
        %v958 = vadd.f32 %v883, %v943
        %v959 = vadd.f32 %v884, %v946
        %v960 = vadd.f32 %v885, %v949
        %v961 = vadd.f32 %v886, %v952
        %v962 = vld [vmem:[%s887 + $0x1] sm:$0xff]
        %v963 = vld [vmem:[%s887 + $0x11] sm:$0xff]
        %v964 = vld [vmem:[%s887 + $0x21] sm:$0xff]
        %v965 = vld [vmem:[%s887 + $0x31] sm:$0xff]
        %v966 = vld [vmem:[%s887 + $0x41] sm:$0xff]
        %v967 = vld [vmem:[%s887 + $0x51] sm:$0xff]
        %v968 = vld [vmem:[%s887 + $0x61] sm:$0xff]
        %v969 = vld [vmem:[%s887 + $0x71] sm:$0xff]
        %s970 = scalar_lea.vmem [#allocation8], 896
        %v971 = vld [vmem:[%s970] sm:$0xff]
        %v972 = vld [vmem:[%s970 + $0x8] sm:$0xff]
        %v973 = vld [vmem:[%s970 + $0x10] sm:$0xff]
        %v974 = vld [vmem:[%s970 + $0x18] sm:$0xff]
        %v975 = vld [vmem:[%s970 + $0x20] sm:$0xff]
        %v976 = vld [vmem:[%s970 + $0x28] sm:$0xff]
        %v977 = vld [vmem:[%s970 + $0x30] sm:$0xff]
        %v978 = vld [vmem:[%s970 + $0x38] sm:$0xff]
        %v979 = vld [vmem:[%s970 + $0x40] sm:$0xff]
        %v980 = vld [vmem:[%s970 + $0x48] sm:$0xff]
        %v981 = vld [vmem:[%s970 + $0x50] sm:$0xff]
        %v982 = vld [vmem:[%s970 + $0x58] sm:$0xff]
        %v983 = vld [vmem:[%s970 + $0x60] sm:$0xff]
        %v984 = vld [vmem:[%s970 + $0x68] sm:$0xff]
        %v985 = vld [vmem:[%s970 + $0x70] sm:$0xff]
        %v986 = vld [vmem:[%s970 + $0x78] sm:$0xff]
        %987 = vmatpush.msra.mxu0 %v986
        %988 = vmatpush.msra.mxu0 %v985
        %989 = vmatpush.msra.mxu0 %v984
        %990 = vmatpush.msra.mxu0 %v983
        %991 = vmatpush.msra.mxu0 %v982
        %992 = vmatpush.msra.mxu0 %v981
        %993 = vmatpush.msra.mxu0 %v980
        %994 = vmatpush.msra.mxu0 %v979
        %995 = vmatpush.msra.mxu0 %v978
        %996 = vmatpush.msra.mxu0 %v977
        %997 = vmatpush.msra.mxu0 %v976
        %998 = vmatpush.msra.mxu0 %v975
        %999 = vmatpush.msra.mxu0 %v974
        %1000 = vmatpush.msra.mxu0 %v973
        %1001 = vmatpush.msra.mxu0 %v972
        %1002 = vmatpush.msra.mxu0 %v971
        %1003 = vmatmul.f32.gmra.mxu0 %v962
        %v1004 = vpop.f32.mrf.mxu0
        %v1005 = vadd.f32 0.0, %v1004
        %1006 = vmatmul.f32.gmra.mxu0 %v963
        %v1007 = vpop.f32.mrf.mxu0
        %v1008 = vadd.f32 0.0, %v1007
        %1009 = vmatmul.f32.gmra.mxu0 %v964
        %v1010 = vpop.f32.mrf.mxu0
        %v1011 = vadd.f32 0.0, %v1010
        %1012 = vmatmul.f32.gmra.mxu0 %v965
        %v1013 = vpop.f32.mrf.mxu0
        %v1014 = vadd.f32 0.0, %v1013
        %1015 = vmatmul.f32.gmra.mxu0 %v966
        %v1016 = vpop.f32.mrf.mxu0
        %v1017 = vadd.f32 0.0, %v1016
        %1018 = vmatmul.f32.gmra.mxu0 %v967
        %v1019 = vpop.f32.mrf.mxu0
        %v1020 = vadd.f32 0.0, %v1019
        %1021 = vmatmul.f32.gmra.mxu0 %v968
        %v1022 = vpop.f32.mrf.mxu0
        %v1023 = vadd.f32 0.0, %v1022
        %1024 = vmatmul.f32.gmra.mxu0 %v969
        %v1025 = vpop.f32.mrf.mxu0
        %v1026 = vadd.f32 0.0, %v1025
        %1027 = vdwg.mxu0
        %v1028 = vadd.f32 %v954, %v1005
        %v1029 = vadd.f32 %v955, %v1008
        %v1030 = vadd.f32 %v956, %v1011
        %v1031 = vadd.f32 %v957, %v1014
        %v1032 = vadd.f32 %v958, %v1017
        %v1033 = vadd.f32 %v959, %v1020
        %v1034 = vadd.f32 %v960, %v1023
        %v1035 = vadd.f32 %v961, %v1026
        %v1036 = vld [vmem:[%s887 + $0x2] sm:$0xff]
        %v1037 = vld [vmem:[%s887 + $0x12] sm:$0xff]
        %v1038 = vld [vmem:[%s887 + $0x22] sm:$0xff]
        %v1039 = vld [vmem:[%s887 + $0x32] sm:$0xff]
        %v1040 = vld [vmem:[%s887 + $0x42] sm:$0xff]
        %v1041 = vld [vmem:[%s887 + $0x52] sm:$0xff]
        %v1042 = vld [vmem:[%s887 + $0x62] sm:$0xff]
        %v1043 = vld [vmem:[%s887 + $0x72] sm:$0xff]
        %s1044 = scalar_lea.vmem [#allocation8], 1024
        %v1045 = vld [vmem:[%s1044] sm:$0xff]
        %v1046 = vld [vmem:[%s1044 + $0x8] sm:$0xff]
        %v1047 = vld [vmem:[%s1044 + $0x10] sm:$0xff]
        %v1048 = vld [vmem:[%s1044 + $0x18] sm:$0xff]
        %v1049 = vld [vmem:[%s1044 + $0x20] sm:$0xff]
        %v1050 = vld [vmem:[%s1044 + $0x28] sm:$0xff]
        %v1051 = vld [vmem:[%s1044 + $0x30] sm:$0xff]
        %v1052 = vld [vmem:[%s1044 + $0x38] sm:$0xff]
        %v1053 = vld [vmem:[%s1044 + $0x40] sm:$0xff]
        %v1054 = vld [vmem:[%s1044 + $0x48] sm:$0xff]
        %v1055 = vld [vmem:[%s1044 + $0x50] sm:$0xff]
        %v1056 = vld [vmem:[%s1044 + $0x58] sm:$0xff]
        %v1057 = vld [vmem:[%s1044 + $0x60] sm:$0xff]
        %v1058 = vld [vmem:[%s1044 + $0x68] sm:$0xff]
        %v1059 = vld [vmem:[%s1044 + $0x70] sm:$0xff]
        %v1060 = vld [vmem:[%s1044 + $0x78] sm:$0xff]
        %1061 = vmatpush.msra.mxu0 %v1060
        %1062 = vmatpush.msra.mxu0 %v1059
        %1063 = vmatpush.msra.mxu0 %v1058
        %1064 = vmatpush.msra.mxu0 %v1057
        %1065 = vmatpush.msra.mxu0 %v1056
        %1066 = vmatpush.msra.mxu0 %v1055
        %1067 = vmatpush.msra.mxu0 %v1054
        %1068 = vmatpush.msra.mxu0 %v1053
        %1069 = vmatpush.msra.mxu0 %v1052
        %1070 = vmatpush.msra.mxu0 %v1051
        %1071 = vmatpush.msra.mxu0 %v1050
        %1072 = vmatpush.msra.mxu0 %v1049
        %1073 = vmatpush.msra.mxu0 %v1048
        %1074 = vmatpush.msra.mxu0 %v1047
        %1075 = vmatpush.msra.mxu0 %v1046
        %1076 = vmatpush.msra.mxu0 %v1045
        %1077 = vmatmul.f32.gmra.mxu0 %v1036
        %v1078 = vpop.f32.mrf.mxu0
        %v1079 = vadd.f32 0.0, %v1078
        %1080 = vmatmul.f32.gmra.mxu0 %v1037
        %v1081 = vpop.f32.mrf.mxu0
        %v1082 = vadd.f32 0.0, %v1081
        %1083 = vmatmul.f32.gmra.mxu0 %v1038
        %v1084 = vpop.f32.mrf.mxu0
        %v1085 = vadd.f32 0.0, %v1084
        %1086 = vmatmul.f32.gmra.mxu0 %v1039
        %v1087 = vpop.f32.mrf.mxu0
        %v1088 = vadd.f32 0.0, %v1087
        %1089 = vmatmul.f32.gmra.mxu0 %v1040
        %v1090 = vpop.f32.mrf.mxu0
        %v1091 = vadd.f32 0.0, %v1090
        %1092 = vmatmul.f32.gmra.mxu0 %v1041
        %v1093 = vpop.f32.mrf.mxu0
        %v1094 = vadd.f32 0.0, %v1093
        %1095 = vmatmul.f32.gmra.mxu0 %v1042
        %v1096 = vpop.f32.mrf.mxu0
        %v1097 = vadd.f32 0.0, %v1096
        %1098 = vmatmul.f32.gmra.mxu0 %v1043
        %v1099 = vpop.f32.mrf.mxu0
        %v1100 = vadd.f32 0.0, %v1099
        %1101 = vdwg.mxu0
        %v1102 = vadd.f32 %v1028, %v1079
        %v1103 = vadd.f32 %v1029, %v1082
        %v1104 = vadd.f32 %v1030, %v1085
        %v1105 = vadd.f32 %v1031, %v1088
        %v1106 = vadd.f32 %v1032, %v1091
        %v1107 = vadd.f32 %v1033, %v1094
        %v1108 = vadd.f32 %v1034, %v1097
        %v1109 = vadd.f32 %v1035, %v1100
        %v1110 = vld [vmem:[%s5] sm:$0x1]
        %v1112 = vperm.slane %v1110, 0
        %v1114 = vadd.f32 %v1102, %v1112
        %v1115 = vadd.f32 %v1103, %v1112
        %v1116 = vadd.f32 %v1104, %v1112
        %v1117 = vadd.f32 %v1105, %v1112
        %v1118 = vadd.f32 %v1106, %v1112
        %v1119 = vadd.f32 %v1107, %v1112
        %v1120 = vadd.f32 %v1108, %v1112
        %v1121 = vadd.f32 %v1109, %v1112
        %v1122 = vmax.f32 %v1114, 0.0
        %v1123 = vmax.f32 %v1115, 0.0
        %v1124 = vmax.f32 %v1116, 0.0
        %v1125 = vmax.f32 %v1117, 0.0
        %v1126 = vmax.f32 %v1118, 0.0
        %v1127 = vmax.f32 %v1119, 0.0
        %v1128 = vmax.f32 %v1120, 0.0
        %v1129 = vmax.f32 %v1121, 0.0
        %v1130 = vld [vmem:[#allocation9] sm:$0xff]
        %v1131 = vld [vmem:[#allocation9 + $0x8] sm:$0xff]
        %v1132 = vld [vmem:[#allocation9 + $0x10] sm:$0xff]
        %v1133 = vld [vmem:[#allocation9 + $0x18] sm:$0xff]
        %v1134 = vld [vmem:[#allocation9 + $0x20] sm:$0xff]
        %v1135 = vld [vmem:[#allocation9 + $0x28] sm:$0xff]
        %v1136 = vld [vmem:[#allocation9 + $0x30] sm:$0xff]
        %v1137 = vld [vmem:[#allocation9 + $0x38] sm:$0xff]
        %v1138 = vld [vmem:[#allocation9 + $0x40] sm:$0xff]
        %v1139 = vld [vmem:[#allocation9 + $0x48] sm:$0xff]
        %v1140 = vld [vmem:[#allocation9 + $0x50] sm:$0xff]
        %v1141 = vld [vmem:[#allocation9 + $0x58] sm:$0xff]
        %v1142 = vld [vmem:[#allocation9 + $0x60] sm:$0xff]
        %v1143 = vld [vmem:[#allocation9 + $0x68] sm:$0xff]
        %v1144 = vld [vmem:[#allocation9 + $0x70] sm:$0xff]
        %v1145 = vld [vmem:[#allocation9 + $0x78] sm:$0xff]
        %v1146 = vld [vmem:[%s6] sm:$0x1]
        %v1148 = vperm.slane %v1146, 0
        %1150 = vmatpush.msra.mxu0 %v1145
        %1151 = vmatpush.msra.mxu0 %v1144
        %1152 = vmatpush.msra.mxu0 %v1143
        %1153 = vmatpush.msra.mxu0 %v1142
        %1154 = vmatpush.msra.mxu0 %v1141
        %1155 = vmatpush.msra.mxu0 %v1140
        %1156 = vmatpush.msra.mxu0 %v1139
        %1157 = vmatpush.msra.mxu0 %v1138
        %1158 = vmatpush.msra.mxu0 %v1137
        %1159 = vmatpush.msra.mxu0 %v1136
        %1160 = vmatpush.msra.mxu0 %v1135
        %1161 = vmatpush.msra.mxu0 %v1134
        %1162 = vmatpush.msra.mxu0 %v1133
        %1163 = vmatpush.msra.mxu0 %v1132
        %1164 = vmatpush.msra.mxu0 %v1131
        %1165 = vmatpush.msra.mxu0 %v1130
        %1166 = vmatmul.f32.gmra.mxu0 %v1122
        %v1167 = vpop.f32.mrf.mxu0
        %v1168 = vadd.f32 %v1148, %v1167
        %1169 = vmatmul.f32.gmra.mxu0 %v1123
        %v1170 = vpop.f32.mrf.mxu0
        %v1171 = vadd.f32 %v1148, %v1170
        %1172 = vmatmul.f32.gmra.mxu0 %v1124
        %v1173 = vpop.f32.mrf.mxu0
        %v1174 = vadd.f32 %v1148, %v1173
        %1175 = vmatmul.f32.gmra.mxu0 %v1125
        %v1176 = vpop.f32.mrf.mxu0
        %v1177 = vadd.f32 %v1148, %v1176
        %1178 = vmatmul.f32.gmra.mxu0 %v1126
        %v1179 = vpop.f32.mrf.mxu0
        %v1180 = vadd.f32 %v1148, %v1179
        %1181 = vmatmul.f32.gmra.mxu0 %v1127
        %v1182 = vpop.f32.mrf.mxu0
        %v1183 = vadd.f32 %v1148, %v1182
        %1184 = vmatmul.f32.gmra.mxu0 %v1128
        %v1185 = vpop.f32.mrf.mxu0
        %v1186 = vadd.f32 %v1148, %v1185
        %1187 = vmatmul.f32.gmra.mxu0 %v1129
        %v1188 = vpop.f32.mrf.mxu0
        %v1189 = vadd.f32 %v1148, %v1188
        %1190 = vdwg.mxu0
        %v1191 = vld [vmem:[%s302] sm:$0xff]
        %v1192 = vld [vmem:[%s302 + $0x8] sm:$0xff]
        %v1193 = vld [vmem:[%s302 + $0x10] sm:$0xff]
        %v1194 = vld [vmem:[%s302 + $0x18] sm:$0xff]
        %v1195 = vld [vmem:[%s302 + $0x20] sm:$0xff]
        %v1196 = vld [vmem:[%s302 + $0x28] sm:$0xff]
        %v1197 = vld [vmem:[%s302 + $0x30] sm:$0xff]
        %v1198 = vld [vmem:[%s302 + $0x38] sm:$0xff]
        %v1199 = vadd.f32 %v1168, %v1191
        %v1200 = vadd.f32 %v1171, %v1192
        %v1201 = vadd.f32 %v1174, %v1193
        %v1202 = vadd.f32 %v1177, %v1194
        %v1203 = vadd.f32 %v1180, %v1195
        %v1204 = vadd.f32 %v1183, %v1196
        %v1205 = vadd.f32 %v1186, %v1197
        %v1206 = vadd.f32 %v1189, %v1198
        %v1207 = vmax.f32 %v1199, 0.0
        %v1208 = vmax.f32 %v1200, 0.0
        %v1209 = vmax.f32 %v1201, 0.0
        %v1210 = vmax.f32 %v1202, 0.0
        %v1211 = vmax.f32 %v1203, 0.0
        %v1212 = vmax.f32 %v1204, 0.0
        %v1213 = vmax.f32 %v1205, 0.0
        %v1214 = vmax.f32 %v1206, 0.0
        %1215 = vst [vmem:[%s348] sm:$0xff] %v1207
        %1216 = vst [vmem:[%s348 + $0x8] sm:$0xff] %v1208
        %1217 = vst [vmem:[%s348 + $0x10] sm:$0xff] %v1209
        %1218 = vst [vmem:[%s348 + $0x18] sm:$0xff] %v1210
        %1219 = vst [vmem:[%s348 + $0x20] sm:$0xff] %v1211
        %1220 = vst [vmem:[%s348 + $0x28] sm:$0xff] %v1212
        %1221 = vst [vmem:[%s348 + $0x30] sm:$0xff] %v1213
        %1222 = vst [vmem:[%s348 + $0x38] sm:$0xff] %v1214
        %s1223 = sand.u32 %s186, 1
        %s1224 = scalar_lea.sflag [#allocation5], %s1223
        %s1225 = sand.u32 %s186, 1
        %s1226 = smul.addr %s1225, 64
        %s1227 = scalar_lea.vmem [#allocation11], %s1226
        // Predicated region
        $region65: #{tpu_custom_call.1} parent=47 // pred_check
          %p1228 = pneg %p196
        $region66: #{tpu_custom_call.1} parent=47 // pred_check_branch
          %1230 = sbr.rel (%p1228) target = $region68
        $region67: #{tpu_custom_call.1} parent=47 // pred_region
          %1232 = vsyncadd %s1224, 0
          %s1233 = smul.addr %s26, 8
          %s1234 = smul.addr %s1233, 8
          %s1235 = scalar_lea.hbm %s7, %s1234
          %s1236 = sshll.u32 %s1227, 4
          %s1237 = int_to_ptr.vmem [resolvable:$true] %s1236
          %s1238 = sshll.u32 %s1235, 4
          %s1239 = int_to_ptr.hbm [resolvable:$true] %s1238
          %1244 = dma.vmem_to_hbm [thread:$0]  %s1237, 1024, %s1239, %s1224, 128, 128, 8
        $region68: #{tpu_custom_call.1} parent=47 // pred_fallthru
          _
      $region48: #{tpu_custom_call.1} parent=5 // pred_fallthru
        _
      %p1245 = scmp.le.s32.totalorder 2, %s21
      // Predicated region
      $region69: #{tpu_custom_call.1} parent=5 // pred_check
        %p1246 = pneg %p1245
      $region70: #{tpu_custom_call.1} parent=5 // pred_check_branch
        %1248 = sbr.rel (%p1246) target = $region72
      $region71: #{tpu_custom_call.1} parent=5 // pred_region
        %s1249 = ssub.s32 %s21, 2
        // Predicated region
        $region73: #{tpu_custom_call.1} parent=71 // pred_check
          %p1250 = pneg %p202
        $region74: #{tpu_custom_call.1} parent=71 // pred_check_branch
          %1252 = sbr.rel (%p1250) target = $region76
        $region75: #{tpu_custom_call.1} parent=71 // pred_region
          %s1253 = sand.u32 %s187, 1
          %s1254 = scalar_lea.sflag [#allocation5], %s1253
          %s1255 = sand.u32 %s187, 1
          %s1256 = smul.addr %s1255, 64
          %s1257 = scalar_lea.vmem [#allocation11], %s1256
          %1259 = dma.done %s1254, 1024
        $region76: #{tpu_custom_call.1} parent=71 // pred_fallthru
          _
      $region72: #{tpu_custom_call.1} parent=5 // pred_fallthru
        _
    $region6: #{tpu_custom_call.1} parent=1 // loop_footer
      %s25 = sadd.s32 1, %s21
    $region7: #{tpu_custom_call.1} parent=1 // loop_footer_branch
      %20 = sbr.rel target = $region3
    $region8: #{tpu_custom_call.1} parent=1 // loop_exit
      _
    %1260 = vsyncpa [#allocation4], 1
    %s1261 = scalar_lea.sflag [#allocation4], 1
    %1262 = vsyncpa %s1261, 1
    %1263 = vsyncpa [#allocation7], 1
    %1264 = vsyncpa [#allocation10], 1
    %1265 = vsyncpa [#allocation5], 1
    %s1266 = scalar_lea.sflag [#allocation5], 1
    %1267 = vsyncpa %s1266, 1

</llo_original>
